<compile_context>
chip_gen: v7x
topology: tpu7x:2x2x1
jax: 0.10.0
libtpu: 0.0.40
codegen_flags: <defaults>
</compile_context>

<pallas_src>
import functools
import math

import jax
import jax.numpy as jnp
from jax.experimental import pallas as pl
from jax.experimental.pallas import tpu as pltpu


# ---------------------------------------------------------------------------
# Fused Pallas kernel: num_layers x LSTM + Linear, batch == 1
# ---------------------------------------------------------------------------
def _rnn_fused_kernel(*refs, num_layers, hidden_size, seq_len):
    """Ref layout (inputs, outputs, scratch):
      x_ref                        (S, F_in)            fp32
      per layer l: wih_t (F_l,4H) bf16, whh_t (H,4H) bf16, b (1,4H) fp32
      h0_ref, c0_ref               (L, H)               fp32
      wlin_ref (H, O) bf16, blin_ref (1, O) fp32
      logits_ref (S, O), hT_ref (L, H), cT_ref (L, H)
      xg0_ref (S, 4H) fp32 scratch, outseq_ref (S, H) fp32 scratch
    Gate column order is [i, f, o, g] (permuted from PyTorch's i,f,g,o at init).
    """
    H = hidden_size
    L = num_layers
    S = seq_len

    idx = 0
    x_ref = refs[idx]; idx += 1
    layer_refs = []
    for _ in range(L):
        layer_refs.append((refs[idx], refs[idx + 1], refs[idx + 2]))
        idx += 3
    h0_ref, c0_ref, wlin_ref, blin_ref = refs[idx:idx + 4]; idx += 4
    logits_ref, hT_ref, cT_ref = refs[idx:idx + 3]; idx += 3
    xg0_ref, outseq_ref = refs[idx:idx + 2]

    # Hoist all weight / bias loads out of the time loop.
    wih = [lr[0][...] for lr in layer_refs]      # (F_l, 4H) bf16
    whh = [lr[1][...] for lr in layer_refs]      # (H, 4H)  bf16
    b = [lr[2][...] for lr in layer_refs]        # (1, 4H)  fp32

    # Layer-0 input->hidden contribution for the whole sequence in ONE MXU
    # matmul (off the recurrence critical path), parked in VMEM scratch.
    x_bf = x_ref[...].astype(jnp.bfloat16)
    xg0_ref[...] = (
        jnp.dot(x_bf, wih[0], preferred_element_type=jnp.float32) + b[0]
    )

    h = [h0_ref[pl.ds(l, 1), :].astype(jnp.float32) for l in range(L)]   # (1, H)
    c = [c0_ref[pl.ds(l, 1), :].astype(jnp.float32) for l in range(L)]   # (1, H)
    h_bf = [hl.astype(jnp.bfloat16) for hl in h]

    def lstm_cell(gates, c_prev):
        # gates: (1, 4H) fp32, column order [i, f, o, g].
        if H % 128 == 0:
            # Lane-aligned split: sigmoid on 3H lanes, tanh on H lanes only.
            sig = jax.nn.sigmoid(gates[:, : 3 * H])
        else:
            # Tiny H (3H not lane aligned): one full-width sigmoid is cheaper
            # than masked partial-vreg activations.
            sig = jax.nn.sigmoid(gates)
        i_g = sig[:, 0 * H:1 * H]
        f_g = sig[:, 1 * H:2 * H]
        o_g = sig[:, 2 * H:3 * H]
        g_g = jnp.tanh(gates[:, 3 * H:4 * H])
        c_new = f_g * c_prev + i_g * g_g
        h_new = o_g * jnp.tanh(c_new)
        return h_new, c_new

    # Fully unrolled wavefront: time outer, layers inner.  Step t of layer
    # l+1 depends only on step t of layer l, so the scheduler can overlap
    # MXU/EUP work of adjacent layers.
    for t in range(S):
        # Layer 0: input contribution read back from the VMEM slab (cheap vld).
        gates = xg0_ref[pl.ds(t, 1), :] + jnp.dot(
            h_bf[0], whh[0], preferred_element_type=jnp.float32)
        h[0], c[0] = lstm_cell(gates, c[0])
        h_bf[0] = h[0].astype(jnp.bfloat16)

        for l in range(1, L):
            gates = (
                jnp.dot(h_bf[l - 1], wih[l], preferred_element_type=jnp.float32)
                + b[l]
                + jnp.dot(h_bf[l], whh[l], preferred_element_type=jnp.float32)
            )
            h[l], c[l] = lstm_cell(gates, c[l])
            h_bf[l] = h[l].astype(jnp.bfloat16)
        # TODO(synk): inter-layer dropout only acts in train mode; this
        #             inference path is a no-op.

        # One cheap per-step store; keeps vreg pressure bounded in S.
        outseq_ref[pl.ds(t, 1), :] = h[L - 1]

    # Fused linear head: one batched MXU matmul + a single full-slab store.
    # TODO(synk): pad O/H to multiples of 128 for unmasked vst once they scale.
    logits_ref[...] = (
        jnp.dot(outseq_ref[...].astype(jnp.bfloat16), wlin_ref[...],
                preferred_element_type=jnp.float32)
        + blin_ref[...]
    ).astype(logits_ref.dtype)

    for l in range(L):
        hT_ref[pl.ds(l, 1), :] = h[l].astype(hT_ref.dtype)
        cT_ref[pl.ds(l, 1), :] = c[l].astype(cT_ref.dtype)


# ---------------------------------------------------------------------------
# Wrapper
# ---------------------------------------------------------------------------
def _vmem_capacity_bytes():
    try:
        return int(pltpu.get_tpu_info().vmem_capacity_bytes)
    except Exception:
        return 128 << 20   # conservative fallback (v5e/v6e physical VMEM)


def rnn_forward(x, layers, h0, c0, w_lin_t, b_lin):
    """x: (S, F_in) fp32; h0/c0: (L, H); returns logits (S, O), h_n/c_n (L, H)."""
    S, F_in = x.shape
    L, H = h0.shape
    O = w_lin_t.shape[1]

    kernel = functools.partial(_rnn_fused_kernel, num_layers=L,
                               hidden_size=H, seq_len=S)

    inputs = [x]
    for p in layers:
        inputs += [p["w_ih_t"], p["w_hh_t"], p["b"]]
    inputs += [h0, c0, w_lin_t, b_lin]

    # Advisory cost estimate for XLA's scheduler around the custom call.
    flops = 2 * S * F_in * 4 * H                      # layer-0 batched x @ W_ih
    flops += 2 * S * L * H * 4 * H                    # per-step h @ W_hh
    flops += 2 * S * max(L - 1, 0) * H * 4 * H        # per-step x @ W_ih, layers>=1
    flops += 10 * S * L * H                           # gate elementwise
    flops += 2 * S * H * O                            # linear head
    sig_elems = 3 * H if H % 128 == 0 else 4 * H
    transcendentals = L * S * (sig_elems + 2 * H)     # sigmoid + tanh(g) + tanh(c)
    bytes_in = sum(int(a.size) * a.dtype.itemsize for a in inputs)
    bytes_out = (S * O + 2 * L * H) * x.dtype.itemsize
    bytes_accessed = int(bytes_in + bytes_out)

    scratch_bytes = (S * 4 * H + S * H) * 4
    vmem_cap = _vmem_capacity_bytes()
    vmem_limit = int(min(
        max(2 * bytes_accessed + scratch_bytes + (1 << 20), 8 << 20),
        int(0.75 * vmem_cap)))

    logits, hT, cT = pl.pallas_call(
        kernel,
        out_shape=(
            jax.ShapeDtypeStruct((S, O), x.dtype),
            jax.ShapeDtypeStruct((L, H), x.dtype),
            jax.ShapeDtypeStruct((L, H), x.dtype),
        ),
        scratch_shapes=[
            pltpu.VMEM((S, 4 * H), jnp.float32),   # layer-0 gate contributions
            pltpu.VMEM((S, H), jnp.float32),       # last-layer output sequence
        ],
        compiler_params=pltpu.CompilerParams(vmem_limit_bytes=vmem_limit),
        cost_estimate=pl.CostEstimate(flops=int(flops),
                                      transcendentals=int(transcendentals),
                                      bytes_accessed=bytes_accessed),
    )(*inputs)
    return logits, hT, cT


def _reorder_gates(w):
    """Permute PyTorch gate blocks (i, f, g, o) -> (i, f, o, g) along axis 0."""
    i, f, g, o = jnp.split(w, 4, axis=0)
    return jnp.concatenate([i, f, o, g], axis=0)


class RNNPallas:
    """JAX/Pallas port of the PyTorch RNN module (nn.LSTM + nn.Linear)."""

    def __init__(self, key, input_size, hidden_size, output_size, num_layers,
                 dropout):
        self.input_size = input_size
        self.hidden_size = hidden_size
        self.output_size = output_size
        self.num_layers = num_layers
        self.dropout = dropout  # TODO(synk): dropout is a no-op in this inference-only path.

        # Deterministic init, mirroring PyTorch's U(-1/sqrt(H), 1/sqrt(H)).
        k = 1.0 / math.sqrt(hidden_size)
        keys = jax.random.split(key, 4 * num_layers + 2)
        self.layers = []
        ki = 0
        for layer in range(num_layers):
            in_sz = input_size if layer == 0 else hidden_size
            w_ih = jax.random.uniform(keys[ki], (4 * hidden_size, in_sz),
                                      jnp.float32, -k, k); ki += 1
            w_hh = jax.random.uniform(keys[ki], (4 * hidden_size, hidden_size),
                                      jnp.float32, -k, k); ki += 1
            b_ih = jax.random.uniform(keys[ki], (4 * hidden_size,),
                                      jnp.float32, -k, k); ki += 1
            b_hh = jax.random.uniform(keys[ki], (4 * hidden_size,),
                                      jnp.float32, -k, k); ki += 1
            self.layers.append({
                # bf16 on the MXU operand side; gate columns in [i, f, o, g].
                "w_ih_t": _reorder_gates(w_ih).T.astype(jnp.bfloat16),  # (in, 4H)
                "w_hh_t": _reorder_gates(w_hh).T.astype(jnp.bfloat16),  # (H, 4H)
                "b": _reorder_gates(b_ih + b_hh)[None, :],              # (1, 4H) fp32
            })
        w_lin = jax.random.uniform(keys[ki], (output_size, hidden_size),
                                   jnp.float32, -k, k); ki += 1
        b_lin = jax.random.uniform(keys[ki], (output_size,),
                                   jnp.float32, -k, k)
        self.w_lin_t = w_lin.T.astype(jnp.bfloat16)        # (H, O)
        self.b_lin = b_lin[None, :]                        # (1, O) fp32

        self.initHidden()

    def initHidden(self, hc=None):
        if hc is None:
            self.h0 = jnp.zeros((self.num_layers, 1, self.hidden_size),
                                jnp.float32)
            self.c0 = jnp.zeros((self.num_layers, 1, self.hidden_size),
                                jnp.float32)
        else:
            self.h0, self.c0 = hc

    def __call__(self, x):
        # x: (seq_len, 1, input_size) -> logits (seq_len, output_size),
        #                                (h_n, c_n) each (num_layers, 1, H)
        seq = x[:, 0, :]                                   # squeeze batch dim
        h0_2d = self.h0[:, 0, :]                           # (L, H)
        c0_2d = self.c0[:, 0, :]
        logits, hT, cT = rnn_forward(seq, self.layers, h0_2d, c0_2d,
                                     self.w_lin_t, self.b_lin)
        h_n = hT[:, None, :]                               # (L, 1, H)
        c_n = cT[:, None, :]
        return logits, (h_n, c_n)


if __name__ == "__main__":
    SEQ, INPUT, HIDDEN, OUTPUT, LAYERS = 8, 16, 32, 20, 2

    key = jax.random.PRNGKey(0)
    pkey, xkey = jax.random.split(key)
    model = RNNPallas(pkey, INPUT, HIDDEN, OUTPUT, LAYERS, dropout=0.25)
    model.initHidden()

    x = jax.random.normal(xkey, (SEQ, 1, INPUT), jnp.float32)

    logits, (h_n, c_n) = model(x)
    jax.block_until_ready((logits, h_n, c_n))

    assert logits.shape == (SEQ, OUTPUT)
    assert h_n.shape == (LAYERS, 1, HIDDEN)
    assert c_n.shape == (LAYERS, 1, HIDDEN)
    assert bool(jnp.all(jnp.isfinite(logits)))
    print("KERNEL_OK")
</pallas_src>

<mosaic_0001>
module attributes {stable_mosaic.version = 11 : i64} {
  func.func @_rnn_fused_kernel(%arg0: memref<8x16xf32, #tpu.memory_space<vmem>>, %arg1: memref<16x128xbf16, #tpu.memory_space<vmem>>, %arg2: memref<32x128xbf16, #tpu.memory_space<vmem>>, %arg3: memref<1x128xf32, #tpu.memory_space<vmem>>, %arg4: memref<32x128xbf16, #tpu.memory_space<vmem>>, %arg5: memref<32x128xbf16, #tpu.memory_space<vmem>>, %arg6: memref<1x128xf32, #tpu.memory_space<vmem>>, %arg7: memref<2x32xf32, #tpu.memory_space<vmem>>, %arg8: memref<2x32xf32, #tpu.memory_space<vmem>>, %arg9: memref<32x20xbf16, #tpu.memory_space<vmem>>, %arg10: memref<1x20xf32, #tpu.memory_space<vmem>>, %arg11: memref<8x20xf32, #tpu.memory_space<vmem>>, %arg12: memref<2x32xf32, #tpu.memory_space<vmem>>, %arg13: memref<2x32xf32, #tpu.memory_space<vmem>>, %arg14: memref<8x128xf32, #tpu.memory_space<vmem>>, %arg15: memref<8x32xf32, #tpu.memory_space<vmem>>) attributes {dimension_semantics = [], scalar_prefetch = 0 : i64, scratch_operands = 2 : i64, tpu.core_type = #tpu.core_type<tc>} {
    %c0 = arith.constant 0 : index
    %c0_0 = arith.constant 0 : index
    %0 = vector.load %arg1[%c0, %c0_0] : memref<16x128xbf16, #tpu.memory_space<vmem>>, vector<16x128xbf16>
    %c0_1 = arith.constant 0 : index
    %c0_2 = arith.constant 0 : index
    %1 = vector.load %arg4[%c0_1, %c0_2] : memref<32x128xbf16, #tpu.memory_space<vmem>>, vector<32x128xbf16>
    %c0_3 = arith.constant 0 : index
    %c0_4 = arith.constant 0 : index
    %2 = vector.load %arg2[%c0_3, %c0_4] : memref<32x128xbf16, #tpu.memory_space<vmem>>, vector<32x128xbf16>
    %c0_5 = arith.constant 0 : index
    %c0_6 = arith.constant 0 : index
    %3 = vector.load %arg5[%c0_5, %c0_6] : memref<32x128xbf16, #tpu.memory_space<vmem>>, vector<32x128xbf16>
    %c0_7 = arith.constant 0 : index
    %c0_8 = arith.constant 0 : index
    %4 = vector.load %arg3[%c0_7, %c0_8] : memref<1x128xf32, #tpu.memory_space<vmem>>, vector<1x128xf32>
    %c0_9 = arith.constant 0 : index
    %c0_10 = arith.constant 0 : index
    %5 = vector.load %arg6[%c0_9, %c0_10] : memref<1x128xf32, #tpu.memory_space<vmem>>, vector<1x128xf32>
    %c0_11 = arith.constant 0 : index
    %c0_12 = arith.constant 0 : index
    %6 = vector.load %arg0[%c0_11, %c0_12] : memref<8x16xf32, #tpu.memory_space<vmem>>, vector<8x16xf32>
    %7 = arith.truncf %6 : vector<8x16xf32> to vector<8x16xbf16>
    %cst = arith.constant dense<0.000000e+00> : vector<8x128xf32>
    %8 = tpu.matmul %7, %0, %cst {dimension_numbers = #tpu.dot_dimension_numbers<[1], [0], [0], [1], [0, 0, 1, 1], [], []>} : vector<8x16xbf16>, vector<16x128xbf16>, vector<8x128xf32> -> vector<8x128xf32>
    %9 = vector.broadcast %4 : vector<1x128xf32> to vector<8x128xf32>
    %10 = arith.addf %8, %9 : vector<8x128xf32>
    %c0_13 = arith.constant 0 : index
    %c0_14 = arith.constant 0 : index
    %11 = vector.load %arg14[%c0_13, %c0_14] : memref<8x128xf32, #tpu.memory_space<vmem>>, vector<8x128xf32>
    tpu.vector_store %arg14[%c0_13, %c0_14], %10 {strides = array<i32>} : memref<8x128xf32, #tpu.memory_space<vmem>>, vector<8x128xf32>,
    %c0_15 = arith.constant 0 : index
    %c0_16 = arith.constant 0 : index
    %12 = vector.load %arg7[%c0_15, %c0_16] : memref<2x32xf32, #tpu.memory_space<vmem>>, vector<1x32xf32>
    %c1 = arith.constant 1 : index
    %c0_17 = arith.constant 0 : index
    %13 = vector.load %arg7[%c1, %c0_17] : memref<2x32xf32, #tpu.memory_space<vmem>>, vector<1x32xf32>
    %c0_18 = arith.constant 0 : index
    %c0_19 = arith.constant 0 : index
    %14 = vector.load %arg8[%c0_18, %c0_19] : memref<2x32xf32, #tpu.memory_space<vmem>>, vector<1x32xf32>
    %c1_20 = arith.constant 1 : index
    %c0_21 = arith.constant 0 : index
    %15 = vector.load %arg8[%c1_20, %c0_21] : memref<2x32xf32, #tpu.memory_space<vmem>>, vector<1x32xf32>
    %16 = arith.truncf %12 : vector<1x32xf32> to vector<1x32xbf16>
    %17 = arith.truncf %13 : vector<1x32xf32> to vector<1x32xbf16>
    %c0_22 = arith.constant 0 : index
    %c0_23 = arith.constant 0 : index
    %18 = vector.load %arg14[%c0_22, %c0_23] : memref<8x128xf32, #tpu.memory_space<vmem>>, vector<1x128xf32>
    %cst_24 = arith.constant dense<0.000000e+00> : vector<1x128xf32>
    %19 = tpu.matmul %16, %2, %cst_24 {dimension_numbers = #tpu.dot_dimension_numbers<[1], [0], [0], [1], [0, 0, 1, 1], [], []>} : vector<1x32xbf16>, vector<32x128xbf16>, vector<1x128xf32> -> vector<1x128xf32>
    %20 = arith.addf %18, %19 : vector<1x128xf32>
    %21 = arith.negf %20 : vector<1x128xf32>
    %22 = math.exp %21 : vector<1x128xf32>
    %cst_25 = arith.constant 1.000000e+00 : f32
    %23 = vector.broadcast %cst_25 : f32 to vector<1x128xf32>
    %24 = arith.addf %23, %22 : vector<1x128xf32>
    %25 = arith.divf %23, %24 : vector<1x128xf32>
    %26 = vector.extract_strided_slice %25 {offsets = [0, 0], sizes = [1, 32], strides = [1, 1]} : vector<1x128xf32> to vector<1x32xf32>
    %27 = vector.extract_strided_slice %25 {offsets = [0, 32], sizes = [1, 32], strides = [1, 1]} : vector<1x128xf32> to vector<1x32xf32>
    %28 = vector.extract_strided_slice %25 {offsets = [0, 64], sizes = [1, 32], strides = [1, 1]} : vector<1x128xf32> to vector<1x32xf32>
    %29 = vector.extract_strided_slice %20 {offsets = [0, 96], sizes = [1, 32], strides = [1, 1]} : vector<1x128xf32> to vector<1x32xf32>
    %30 = math.tanh %29 : vector<1x32xf32>
    %31 = arith.mulf %27, %14 : vector<1x32xf32>
    %32 = arith.mulf %26, %30 : vector<1x32xf32>
    %33 = arith.addf %31, %32 : vector<1x32xf32>
    %34 = math.tanh %33 : vector<1x32xf32>
    %35 = arith.mulf %28, %34 : vector<1x32xf32>
    %36 = arith.truncf %35 : vector<1x32xf32> to vector<1x32xbf16>
    %cst_26 = arith.constant dense<0.000000e+00> : vector<1x128xf32>
    %37 = tpu.matmul %36, %1, %cst_26 {dimension_numbers = #tpu.dot_dimension_numbers<[1], [0], [0], [1], [0, 0, 1, 1], [], []>} : vector<1x32xbf16>, vector<32x128xbf16>, vector<1x128xf32> -> vector<1x128xf32>
    %38 = arith.addf %37, %5 : vector<1x128xf32>
    %cst_27 = arith.constant dense<0.000000e+00> : vector<1x128xf32>
    %39 = tpu.matmul %17, %3, %cst_27 {dimension_numbers = #tpu.dot_dimension_numbers<[1], [0], [0], [1], [0, 0, 1, 1], [], []>} : vector<1x32xbf16>, vector<32x128xbf16>, vector<1x128xf32> -> vector<1x128xf32>
    %40 = arith.addf %38, %39 : vector<1x128xf32>
    %41 = arith.negf %40 : vector<1x128xf32>
    %42 = math.exp %41 : vector<1x128xf32>
    %cst_28 = arith.constant 1.000000e+00 : f32
    %43 = vector.broadcast %cst_28 : f32 to vector<1x128xf32>
    %44 = arith.addf %43, %42 : vector<1x128xf32>
    %45 = arith.divf %43, %44 : vector<1x128xf32>
    %46 = vector.extract_strided_slice %45 {offsets = [0, 0], sizes = [1, 32], strides = [1, 1]} : vector<1x128xf32> to vector<1x32xf32>
    %47 = vector.extract_strided_slice %45 {offsets = [0, 32], sizes = [1, 32], strides = [1, 1]} : vector<1x128xf32> to vector<1x32xf32>
    %48 = vector.extract_strided_slice %45 {offsets = [0, 64], sizes = [1, 32], strides = [1, 1]} : vector<1x128xf32> to vector<1x32xf32>
    %49 = vector.extract_strided_slice %40 {offsets = [0, 96], sizes = [1, 32], strides = [1, 1]} : vector<1x128xf32> to vector<1x32xf32>
    %50 = math.tanh %49 : vector<1x32xf32>
    %51 = arith.mulf %47, %15 : vector<1x32xf32>
    %52 = arith.mulf %46, %50 : vector<1x32xf32>
    %53 = arith.addf %51, %52 : vector<1x32xf32>
    %54 = math.tanh %53 : vector<1x32xf32>
    %55 = arith.mulf %48, %54 : vector<1x32xf32>
    %56 = arith.truncf %55 : vector<1x32xf32> to vector<1x32xbf16>
    %c0_29 = arith.constant 0 : index
    %c0_30 = arith.constant 0 : index
    %57 = vector.load %arg15[%c0_29, %c0_30] : memref<8x32xf32, #tpu.memory_space<vmem>>, vector<1x32xf32>
    tpu.vector_store %arg15[%c0_29, %c0_30], %55 {strides = array<i32>} : memref<8x32xf32, #tpu.memory_space<vmem>>, vector<1x32xf32>,
    %c1_31 = arith.constant 1 : index
    %c0_32 = arith.constant 0 : index
    %58 = vector.load %arg14[%c1_31, %c0_32] : memref<8x128xf32, #tpu.memory_space<vmem>>, vector<1x128xf32>
    %cst_33 = arith.constant dense<0.000000e+00> : vector<1x128xf32>
    %59 = tpu.matmul %36, %2, %cst_33 {dimension_numbers = #tpu.dot_dimension_numbers<[1], [0], [0], [1], [0, 0, 1, 1], [], []>} : vector<1x32xbf16>, vector<32x128xbf16>, vector<1x128xf32> -> vector<1x128xf32>
    %60 = arith.addf %58, %59 : vector<1x128xf32>
    %61 = arith.negf %60 : vector<1x128xf32>
    %62 = math.exp %61 : vector<1x128xf32>
    %cst_34 = arith.constant 1.000000e+00 : f32
    %63 = vector.broadcast %cst_34 : f32 to vector<1x128xf32>
    %64 = arith.addf %63, %62 : vector<1x128xf32>
    %65 = arith.divf %63, %64 : vector<1x128xf32>
    %66 = vector.extract_strided_slice %65 {offsets = [0, 0], sizes = [1, 32], strides = [1, 1]} : vector<1x128xf32> to vector<1x32xf32>
    %67 = vector.extract_strided_slice %65 {offsets = [0, 32], sizes = [1, 32], strides = [1, 1]} : vector<1x128xf32> to vector<1x32xf32>
    %68 = vector.extract_strided_slice %65 {offsets = [0, 64], sizes = [1, 32], strides = [1, 1]} : vector<1x128xf32> to vector<1x32xf32>
    %69 = vector.extract_strided_slice %60 {offsets = [0, 96], sizes = [1, 32], strides = [1, 1]} : vector<1x128xf32> to vector<1x32xf32>
    %70 = math.tanh %69 : vector<1x32xf32>
    %71 = arith.mulf %67, %33 : vector<1x32xf32>
    %72 = arith.mulf %66, %70 : vector<1x32xf32>
    %73 = arith.addf %71, %72 : vector<1x32xf32>
    %74 = math.tanh %73 : vector<1x32xf32>
    %75 = arith.mulf %68, %74 : vector<1x32xf32>
    %76 = arith.truncf %75 : vector<1x32xf32> to vector<1x32xbf16>
    %cst_35 = arith.constant dense<0.000000e+00> : vector<1x128xf32>
    %77 = tpu.matmul %76, %1, %cst_35 {dimension_numbers = #tpu.dot_dimension_numbers<[1], [0], [0], [1], [0, 0, 1, 1], [], []>} : vector<1x32xbf16>, vector<32x128xbf16>, vector<1x128xf32> -> vector<1x128xf32>
    %78 = arith.addf %77, %5 : vector<1x128xf32>
    %cst_36 = arith.constant dense<0.000000e+00> : vector<1x128xf32>
    %79 = tpu.matmul %56, %3, %cst_36 {dimension_numbers = #tpu.dot_dimension_numbers<[1], [0], [0], [1], [0, 0, 1, 1], [], []>} : vector<1x32xbf16>, vector<32x128xbf16>, vector<1x128xf32> -> vector<1x128xf32>
    %80 = arith.addf %78, %79 : vector<1x128xf32>
    %81 = arith.negf %80 : vector<1x128xf32>
    %82 = math.exp %81 : vector<1x128xf32>
    %cst_37 = arith.constant 1.000000e+00 : f32
    %83 = vector.broadcast %cst_37 : f32 to vector<1x128xf32>
    %84 = arith.addf %83, %82 : vector<1x128xf32>
    %85 = arith.divf %83, %84 : vector<1x128xf32>
    %86 = vector.extract_strided_slice %85 {offsets = [0, 0], sizes = [1, 32], strides = [1, 1]} : vector<1x128xf32> to vector<1x32xf32>
    %87 = vector.extract_strided_slice %85 {offsets = [0, 32], sizes = [1, 32], strides = [1, 1]} : vector<1x128xf32> to vector<1x32xf32>
    %88 = vector.extract_strided_slice %85 {offsets = [0, 64], sizes = [1, 32], strides = [1, 1]} : vector<1x128xf32> to vector<1x32xf32>
    %89 = vector.extract_strided_slice %80 {offsets = [0, 96], sizes = [1, 32], strides = [1, 1]} : vector<1x128xf32> to vector<1x32xf32>
    %90 = math.tanh %89 : vector<1x32xf32>
    %91 = arith.mulf %87, %53 : vector<1x32xf32>
    %92 = arith.mulf %86, %90 : vector<1x32xf32>
    %93 = arith.addf %91, %92 : vector<1x32xf32>
    %94 = math.tanh %93 : vector<1x32xf32>
    %95 = arith.mulf %88, %94 : vector<1x32xf32>
    %96 = arith.truncf %95 : vector<1x32xf32> to vector<1x32xbf16>
    %c1_38 = arith.constant 1 : index
    %c0_39 = arith.constant 0 : index
    %97 = vector.load %arg15[%c1_38, %c0_39] : memref<8x32xf32, #tpu.memory_space<vmem>>, vector<1x32xf32>
    tpu.vector_store %arg15[%c1_38, %c0_39], %95 {strides = array<i32>} : memref<8x32xf32, #tpu.memory_space<vmem>>, vector<1x32xf32>,
    %c2 = arith.constant 2 : index
    %c0_40 = arith.constant 0 : index
    %98 = vector.load %arg14[%c2, %c0_40] : memref<8x128xf32, #tpu.memory_space<vmem>>, vector<1x128xf32>
    %cst_41 = arith.constant dense<0.000000e+00> : vector<1x128xf32>
    %99 = tpu.matmul %76, %2, %cst_41 {dimension_numbers = #tpu.dot_dimension_numbers<[1], [0], [0], [1], [0, 0, 1, 1], [], []>} : vector<1x32xbf16>, vector<32x128xbf16>, vector<1x128xf32> -> vector<1x128xf32>
    %100 = arith.addf %98, %99 : vector<1x128xf32>
    %101 = arith.negf %100 : vector<1x128xf32>
    %102 = math.exp %101 : vector<1x128xf32>
    %cst_42 = arith.constant 1.000000e+00 : f32
    %103 = vector.broadcast %cst_42 : f32 to vector<1x128xf32>
    %104 = arith.addf %103, %102 : vector<1x128xf32>
    %105 = arith.divf %103, %104 : vector<1x128xf32>
    %106 = vector.extract_strided_slice %105 {offsets = [0, 0], sizes = [1, 32], strides = [1, 1]} : vector<1x128xf32> to vector<1x32xf32>
    %107 = vector.extract_strided_slice %105 {offsets = [0, 32], sizes = [1, 32], strides = [1, 1]} : vector<1x128xf32> to vector<1x32xf32>
    %108 = vector.extract_strided_slice %105 {offsets = [0, 64], sizes = [1, 32], strides = [1, 1]} : vector<1x128xf32> to vector<1x32xf32>
    %109 = vector.extract_strided_slice %100 {offsets = [0, 96], sizes = [1, 32], strides = [1, 1]} : vector<1x128xf32> to vector<1x32xf32>
    %110 = math.tanh %109 : vector<1x32xf32>
    %111 = arith.mulf %107, %73 : vector<1x32xf32>
    %112 = arith.mulf %106, %110 : vector<1x32xf32>
    %113 = arith.addf %111, %112 : vector<1x32xf32>
    %114 = math.tanh %113 : vector<1x32xf32>
    %115 = arith.mulf %108, %114 : vector<1x32xf32>
    %116 = arith.truncf %115 : vector<1x32xf32> to vector<1x32xbf16>
    %cst_43 = arith.constant dense<0.000000e+00> : vector<1x128xf32>
    %117 = tpu.matmul %116, %1, %cst_43 {dimension_numbers = #tpu.dot_dimension_numbers<[1], [0], [0], [1], [0, 0, 1, 1], [], []>} : vector<1x32xbf16>, vector<32x128xbf16>, vector<1x128xf32> -> vector<1x128xf32>
    %118 = arith.addf %117, %5 : vector<1x128xf32>
    %cst_44 = arith.constant dense<0.000000e+00> : vector<1x128xf32>
    %119 = tpu.matmul %96, %3, %cst_44 {dimension_numbers = #tpu.dot_dimension_numbers<[1], [0], [0], [1], [0, 0, 1, 1], [], []>} : vector<1x32xbf16>, vector<32x128xbf16>, vector<1x128xf32> -> vector<1x128xf32>
    %120 = arith.addf %118, %119 : vector<1x128xf32>
    %121 = arith.negf %120 : vector<1x128xf32>
    %122 = math.exp %121 : vector<1x128xf32>
    %cst_45 = arith.constant 1.000000e+00 : f32
    %123 = vector.broadcast %cst_45 : f32 to vector<1x128xf32>
    %124 = arith.addf %123, %122 : vector<1x128xf32>
    %125 = arith.divf %123, %124 : vector<1x128xf32>
    %126 = vector.extract_strided_slice %125 {offsets = [0, 0], sizes = [1, 32], strides = [1, 1]} : vector<1x128xf32> to vector<1x32xf32>
    %127 = vector.extract_strided_slice %125 {offsets = [0, 32], sizes = [1, 32], strides = [1, 1]} : vector<1x128xf32> to vector<1x32xf32>
    %128 = vector.extract_strided_slice %125 {offsets = [0, 64], sizes = [1, 32], strides = [1, 1]} : vector<1x128xf32> to vector<1x32xf32>
    %129 = vector.extract_strided_slice %120 {offsets = [0, 96], sizes = [1, 32], strides = [1, 1]} : vector<1x128xf32> to vector<1x32xf32>
    %130 = math.tanh %129 : vector<1x32xf32>
    %131 = arith.mulf %127, %93 : vector<1x32xf32>
    %132 = arith.mulf %126, %130 : vector<1x32xf32>
    %133 = arith.addf %131, %132 : vector<1x32xf32>
    %134 = math.tanh %133 : vector<1x32xf32>
    %135 = arith.mulf %128, %134 : vector<1x32xf32>
    %136 = arith.truncf %135 : vector<1x32xf32> to vector<1x32xbf16>
    %c2_46 = arith.constant 2 : index
    %c0_47 = arith.constant 0 : index
    %137 = vector.load %arg15[%c2_46, %c0_47] : memref<8x32xf32, #tpu.memory_space<vmem>>, vector<1x32xf32>
    tpu.vector_store %arg15[%c2_46, %c0_47], %135 {strides = array<i32>} : memref<8x32xf32, #tpu.memory_space<vmem>>, vector<1x32xf32>,
    %c3 = arith.constant 3 : index
    %c0_48 = arith.constant 0 : index
    %138 = vector.load %arg14[%c3, %c0_48] : memref<8x128xf32, #tpu.memory_space<vmem>>, vector<1x128xf32>
    %cst_49 = arith.constant dense<0.000000e+00> : vector<1x128xf32>
    %139 = tpu.matmul %116, %2, %cst_49 {dimension_numbers = #tpu.dot_dimension_numbers<[1], [0], [0], [1], [0, 0, 1, 1], [], []>} : vector<1x32xbf16>, vector<32x128xbf16>, vector<1x128xf32> -> vector<1x128xf32>
    %140 = arith.addf %138, %139 : vector<1x128xf32>
    %141 = arith.negf %140 : vector<1x128xf32>
    %142 = math.exp %141 : vector<1x128xf32>
    %cst_50 = arith.constant 1.000000e+00 : f32
    %143 = vector.broadcast %cst_50 : f32 to vector<1x128xf32>
    %144 = arith.addf %143, %142 : vector<1x128xf32>
    %145 = arith.divf %143, %144 : vector<1x128xf32>
    %146 = vector.extract_strided_slice %145 {offsets = [0, 0], sizes = [1, 32], strides = [1, 1]} : vector<1x128xf32> to vector<1x32xf32>
    %147 = vector.extract_strided_slice %145 {offsets = [0, 32], sizes = [1, 32], strides = [1, 1]} : vector<1x128xf32> to vector<1x32xf32>
    %148 = vector.extract_strided_slice %145 {offsets = [0, 64], sizes = [1, 32], strides = [1, 1]} : vector<1x128xf32> to vector<1x32xf32>
    %149 = vector.extract_strided_slice %140 {offsets = [0, 96], sizes = [1, 32], strides = [1, 1]} : vector<1x128xf32> to vector<1x32xf32>
    %150 = math.tanh %149 : vector<1x32xf32>
    %151 = arith.mulf %147, %113 : vector<1x32xf32>
    %152 = arith.mulf %146, %150 : vector<1x32xf32>
    %153 = arith.addf %151, %152 : vector<1x32xf32>
    %154 = math.tanh %153 : vector<1x32xf32>
    %155 = arith.mulf %148, %154 : vector<1x32xf32>
    %156 = arith.truncf %155 : vector<1x32xf32> to vector<1x32xbf16>
    %cst_51 = arith.constant dense<0.000000e+00> : vector<1x128xf32>
    %157 = tpu.matmul %156, %1, %cst_51 {dimension_numbers = #tpu.dot_dimension_numbers<[1], [0], [0], [1], [0, 0, 1, 1], [], []>} : vector<1x32xbf16>, vector<32x128xbf16>, vector<1x128xf32> -> vector<1x128xf32>
    %158 = arith.addf %157, %5 : vector<1x128xf32>
    %cst_52 = arith.constant dense<0.000000e+00> : vector<1x128xf32>
    %159 = tpu.matmul %136, %3, %cst_52 {dimension_numbers = #tpu.dot_dimension_numbers<[1], [0], [0], [1], [0, 0, 1, 1], [], []>} : vector<1x32xbf16>, vector<32x128xbf16>, vector<1x128xf32> -> vector<1x128xf32>
    %160 = arith.addf %158, %159 : vector<1x128xf32>
    %161 = arith.negf %160 : vector<1x128xf32>
    %162 = math.exp %161 : vector<1x128xf32>
    %cst_53 = arith.constant 1.000000e+00 : f32
    %163 = vector.broadcast %cst_53 : f32 to vector<1x128xf32>
    %164 = arith.addf %163, %162 : vector<1x128xf32>
    %165 = arith.divf %163, %164 : vector<1x128xf32>
    %166 = vector.extract_strided_slice %165 {offsets = [0, 0], sizes = [1, 32], strides = [1, 1]} : vector<1x128xf32> to vector<1x32xf32>
    %167 = vector.extract_strided_slice %165 {offsets = [0, 32], sizes = [1, 32], strides = [1, 1]} : vector<1x128xf32> to vector<1x32xf32>
    %168 = vector.extract_strided_slice %165 {offsets = [0, 64], sizes = [1, 32], strides = [1, 1]} : vector<1x128xf32> to vector<1x32xf32>
    %169 = vector.extract_strided_slice %160 {offsets = [0, 96], sizes = [1, 32], strides = [1, 1]} : vector<1x128xf32> to vector<1x32xf32>
    %170 = math.tanh %169 : vector<1x32xf32>
    %171 = arith.mulf %167, %133 : vector<1x32xf32>
    %172 = arith.mulf %166, %170 : vector<1x32xf32>
    %173 = arith.addf %171, %172 : vector<1x32xf32>
    %174 = math.tanh %173 : vector<1x32xf32>
    %175 = arith.mulf %168, %174 : vector<1x32xf32>
    %176 = arith.truncf %175 : vector<1x32xf32> to vector<1x32xbf16>
    %c3_54 = arith.constant 3 : index
    %c0_55 = arith.constant 0 : index
    %177 = vector.load %arg15[%c3_54, %c0_55] : memref<8x32xf32, #tpu.memory_space<vmem>>, vector<1x32xf32>
    tpu.vector_store %arg15[%c3_54, %c0_55], %175 {strides = array<i32>} : memref<8x32xf32, #tpu.memory_space<vmem>>, vector<1x32xf32>,
    %c4 = arith.constant 4 : index
    %c0_56 = arith.constant 0 : index
    %178 = vector.load %arg14[%c4, %c0_56] : memref<8x128xf32, #tpu.memory_space<vmem>>, vector<1x128xf32>
    %cst_57 = arith.constant dense<0.000000e+00> : vector<1x128xf32>
    %179 = tpu.matmul %156, %2, %cst_57 {dimension_numbers = #tpu.dot_dimension_numbers<[1], [0], [0], [1], [0, 0, 1, 1], [], []>} : vector<1x32xbf16>, vector<32x128xbf16>, vector<1x128xf32> -> vector<1x128xf32>
    %180 = arith.addf %178, %179 : vector<1x128xf32>
    %181 = arith.negf %180 : vector<1x128xf32>
    %182 = math.exp %181 : vector<1x128xf32>
    %cst_58 = arith.constant 1.000000e+00 : f32
    %183 = vector.broadcast %cst_58 : f32 to vector<1x128xf32>
    %184 = arith.addf %183, %182 : vector<1x128xf32>
    %185 = arith.divf %183, %184 : vector<1x128xf32>
    %186 = vector.extract_strided_slice %185 {offsets = [0, 0], sizes = [1, 32], strides = [1, 1]} : vector<1x128xf32> to vector<1x32xf32>
    %187 = vector.extract_strided_slice %185 {offsets = [0, 32], sizes = [1, 32], strides = [1, 1]} : vector<1x128xf32> to vector<1x32xf32>
    %188 = vector.extract_strided_slice %185 {offsets = [0, 64], sizes = [1, 32], strides = [1, 1]} : vector<1x128xf32> to vector<1x32xf32>
    %189 = vector.extract_strided_slice %180 {offsets = [0, 96], sizes = [1, 32], strides = [1, 1]} : vector<1x128xf32> to vector<1x32xf32>
    %190 = math.tanh %189 : vector<1x32xf32>
    %191 = arith.mulf %187, %153 : vector<1x32xf32>
    %192 = arith.mulf %186, %190 : vector<1x32xf32>
    %193 = arith.addf %191, %192 : vector<1x32xf32>
    %194 = math.tanh %193 : vector<1x32xf32>
    %195 = arith.mulf %188, %194 : vector<1x32xf32>
    %196 = arith.truncf %195 : vector<1x32xf32> to vector<1x32xbf16>
    %cst_59 = arith.constant dense<0.000000e+00> : vector<1x128xf32>
    %197 = tpu.matmul %196, %1, %cst_59 {dimension_numbers = #tpu.dot_dimension_numbers<[1], [0], [0], [1], [0, 0, 1, 1], [], []>} : vector<1x32xbf16>, vector<32x128xbf16>, vector<1x128xf32> -> vector<1x128xf32>
    %198 = arith.addf %197, %5 : vector<1x128xf32>
    %cst_60 = arith.constant dense<0.000000e+00> : vector<1x128xf32>
    %199 = tpu.matmul %176, %3, %cst_60 {dimension_numbers = #tpu.dot_dimension_numbers<[1], [0], [0], [1], [0, 0, 1, 1], [], []>} : vector<1x32xbf16>, vector<32x128xbf16>, vector<1x128xf32> -> vector<1x128xf32>
    %200 = arith.addf %198, %199 : vector<1x128xf32>
    %201 = arith.negf %200 : vector<1x128xf32>
    %202 = math.exp %201 : vector<1x128xf32>
    %cst_61 = arith.constant 1.000000e+00 : f32
    %203 = vector.broadcast %cst_61 : f32 to vector<1x128xf32>
    %204 = arith.addf %203, %202 : vector<1x128xf32>
    %205 = arith.divf %203, %204 : vector<1x128xf32>
    %206 = vector.extract_strided_slice %205 {offsets = [0, 0], sizes = [1, 32], strides = [1, 1]} : vector<1x128xf32> to vector<1x32xf32>
    %207 = vector.extract_strided_slice %205 {offsets = [0, 32], sizes = [1, 32], strides = [1, 1]} : vector<1x128xf32> to vector<1x32xf32>
    %208 = vector.extract_strided_slice %205 {offsets = [0, 64], sizes = [1, 32], strides = [1, 1]} : vector<1x128xf32> to vector<1x32xf32>
    %209 = vector.extract_strided_slice %200 {offsets = [0, 96], sizes = [1, 32], strides = [1, 1]} : vector<1x128xf32> to vector<1x32xf32>
    %210 = math.tanh %209 : vector<1x32xf32>
    %211 = arith.mulf %207, %173 : vector<1x32xf32>
    %212 = arith.mulf %206, %210 : vector<1x32xf32>
    %213 = arith.addf %211, %212 : vector<1x32xf32>
    %214 = math.tanh %213 : vector<1x32xf32>
    %215 = arith.mulf %208, %214 : vector<1x32xf32>
    %216 = arith.truncf %215 : vector<1x32xf32> to vector<1x32xbf16>
    %c4_62 = arith.constant 4 : index
    %c0_63 = arith.constant 0 : index
    %217 = vector.load %arg15[%c4_62, %c0_63] : memref<8x32xf32, #tpu.memory_space<vmem>>, vector<1x32xf32>
    tpu.vector_store %arg15[%c4_62, %c0_63], %215 {strides = array<i32>} : memref<8x32xf32, #tpu.memory_space<vmem>>, vector<1x32xf32>,
    %c5 = arith.constant 5 : index
    %c0_64 = arith.constant 0 : index
    %218 = vector.load %arg14[%c5, %c0_64] : memref<8x128xf32, #tpu.memory_space<vmem>>, vector<1x128xf32>
    %cst_65 = arith.constant dense<0.000000e+00> : vector<1x128xf32>
    %219 = tpu.matmul %196, %2, %cst_65 {dimension_numbers = #tpu.dot_dimension_numbers<[1], [0], [0], [1], [0, 0, 1, 1], [], []>} : vector<1x32xbf16>, vector<32x128xbf16>, vector<1x128xf32> -> vector<1x128xf32>
    %220 = arith.addf %218, %219 : vector<1x128xf32>
    %221 = arith.negf %220 : vector<1x128xf32>
    %222 = math.exp %221 : vector<1x128xf32>
    %cst_66 = arith.constant 1.000000e+00 : f32
    %223 = vector.broadcast %cst_66 : f32 to vector<1x128xf32>
    %224 = arith.addf %223, %222 : vector<1x128xf32>
    %225 = arith.divf %223, %224 : vector<1x128xf32>
    %226 = vector.extract_strided_slice %225 {offsets = [0, 0], sizes = [1, 32], strides = [1, 1]} : vector<1x128xf32> to vector<1x32xf32>
    %227 = vector.extract_strided_slice %225 {offsets = [0, 32], sizes = [1, 32], strides = [1, 1]} : vector<1x128xf32> to vector<1x32xf32>
    %228 = vector.extract_strided_slice %225 {offsets = [0, 64], sizes = [1, 32], strides = [1, 1]} : vector<1x128xf32> to vector<1x32xf32>
    %229 = vector.extract_strided_slice %220 {offsets = [0, 96], sizes = [1, 32], strides = [1, 1]} : vector<1x128xf32> to vector<1x32xf32>
    %230 = math.tanh %229 : vector<1x32xf32>
    %231 = arith.mulf %227, %193 : vector<1x32xf32>
    %232 = arith.mulf %226, %230 : vector<1x32xf32>
    %233 = arith.addf %231, %232 : vector<1x32xf32>
    %234 = math.tanh %233 : vector<1x32xf32>
    %235 = arith.mulf %228, %234 : vector<1x32xf32>
    %236 = arith.truncf %235 : vector<1x32xf32> to vector<1x32xbf16>
    %cst_67 = arith.constant dense<0.000000e+00> : vector<1x128xf32>
    %237 = tpu.matmul %236, %1, %cst_67 {dimension_numbers = #tpu.dot_dimension_numbers<[1], [0], [0], [1], [0, 0, 1, 1], [], []>} : vector<1x32xbf16>, vector<32x128xbf16>, vector<1x128xf32> -> vector<1x128xf32>
    %238 = arith.addf %237, %5 : vector<1x128xf32>
    %cst_68 = arith.constant dense<0.000000e+00> : vector<1x128xf32>
    %239 = tpu.matmul %216, %3, %cst_68 {dimension_numbers = #tpu.dot_dimension_numbers<[1], [0], [0], [1], [0, 0, 1, 1], [], []>} : vector<1x32xbf16>, vector<32x128xbf16>, vector<1x128xf32> -> vector<1x128xf32>
    %240 = arith.addf %238, %239 : vector<1x128xf32>
    %241 = arith.negf %240 : vector<1x128xf32>
    %242 = math.exp %241 : vector<1x128xf32>
    %cst_69 = arith.constant 1.000000e+00 : f32
    %243 = vector.broadcast %cst_69 : f32 to vector<1x128xf32>
    %244 = arith.addf %243, %242 : vector<1x128xf32>
    %245 = arith.divf %243, %244 : vector<1x128xf32>
    %246 = vector.extract_strided_slice %245 {offsets = [0, 0], sizes = [1, 32], strides = [1, 1]} : vector<1x128xf32> to vector<1x32xf32>
    %247 = vector.extract_strided_slice %245 {offsets = [0, 32], sizes = [1, 32], strides = [1, 1]} : vector<1x128xf32> to vector<1x32xf32>
    %248 = vector.extract_strided_slice %245 {offsets = [0, 64], sizes = [1, 32], strides = [1, 1]} : vector<1x128xf32> to vector<1x32xf32>
    %249 = vector.extract_strided_slice %240 {offsets = [0, 96], sizes = [1, 32], strides = [1, 1]} : vector<1x128xf32> to vector<1x32xf32>
    %250 = math.tanh %249 : vector<1x32xf32>
    %251 = arith.mulf %247, %213 : vector<1x32xf32>
    %252 = arith.mulf %246, %250 : vector<1x32xf32>
    %253 = arith.addf %251, %252 : vector<1x32xf32>
    %254 = math.tanh %253 : vector<1x32xf32>
    %255 = arith.mulf %248, %254 : vector<1x32xf32>
    %256 = arith.truncf %255 : vector<1x32xf32> to vector<1x32xbf16>
    %c5_70 = arith.constant 5 : index
    %c0_71 = arith.constant 0 : index
    %257 = vector.load %arg15[%c5_70, %c0_71] : memref<8x32xf32, #tpu.memory_space<vmem>>, vector<1x32xf32>
    tpu.vector_store %arg15[%c5_70, %c0_71], %255 {strides = array<i32>} : memref<8x32xf32, #tpu.memory_space<vmem>>, vector<1x32xf32>,
    %c6 = arith.constant 6 : index
    %c0_72 = arith.constant 0 : index
    %258 = vector.load %arg14[%c6, %c0_72] : memref<8x128xf32, #tpu.memory_space<vmem>>, vector<1x128xf32>
    %cst_73 = arith.constant dense<0.000000e+00> : vector<1x128xf32>
    %259 = tpu.matmul %236, %2, %cst_73 {dimension_numbers = #tpu.dot_dimension_numbers<[1], [0], [0], [1], [0, 0, 1, 1], [], []>} : vector<1x32xbf16>, vector<32x128xbf16>, vector<1x128xf32> -> vector<1x128xf32>
    %260 = arith.addf %258, %259 : vector<1x128xf32>
    %261 = arith.negf %260 : vector<1x128xf32>
    %262 = math.exp %261 : vector<1x128xf32>
    %cst_74 = arith.constant 1.000000e+00 : f32
    %263 = vector.broadcast %cst_74 : f32 to vector<1x128xf32>
    %264 = arith.addf %263, %262 : vector<1x128xf32>
    %265 = arith.divf %263, %264 : vector<1x128xf32>
    %266 = vector.extract_strided_slice %265 {offsets = [0, 0], sizes = [1, 32], strides = [1, 1]} : vector<1x128xf32> to vector<1x32xf32>
    %267 = vector.extract_strided_slice %265 {offsets = [0, 32], sizes = [1, 32], strides = [1, 1]} : vector<1x128xf32> to vector<1x32xf32>
    %268 = vector.extract_strided_slice %265 {offsets = [0, 64], sizes = [1, 32], strides = [1, 1]} : vector<1x128xf32> to vector<1x32xf32>
    %269 = vector.extract_strided_slice %260 {offsets = [0, 96], sizes = [1, 32], strides = [1, 1]} : vector<1x128xf32> to vector<1x32xf32>
    %270 = math.tanh %269 : vector<1x32xf32>
    %271 = arith.mulf %267, %233 : vector<1x32xf32>
    %272 = arith.mulf %266, %270 : vector<1x32xf32>
    %273 = arith.addf %271, %272 : vector<1x32xf32>
    %274 = math.tanh %273 : vector<1x32xf32>
    %275 = arith.mulf %268, %274 : vector<1x32xf32>
    %276 = arith.truncf %275 : vector<1x32xf32> to vector<1x32xbf16>
    %cst_75 = arith.constant dense<0.000000e+00> : vector<1x128xf32>
    %277 = tpu.matmul %276, %1, %cst_75 {dimension_numbers = #tpu.dot_dimension_numbers<[1], [0], [0], [1], [0, 0, 1, 1], [], []>} : vector<1x32xbf16>, vector<32x128xbf16>, vector<1x128xf32> -> vector<1x128xf32>
    %278 = arith.addf %277, %5 : vector<1x128xf32>
    %cst_76 = arith.constant dense<0.000000e+00> : vector<1x128xf32>
    %279 = tpu.matmul %256, %3, %cst_76 {dimension_numbers = #tpu.dot_dimension_numbers<[1], [0], [0], [1], [0, 0, 1, 1], [], []>} : vector<1x32xbf16>, vector<32x128xbf16>, vector<1x128xf32> -> vector<1x128xf32>
    %280 = arith.addf %278, %279 : vector<1x128xf32>
    %281 = arith.negf %280 : vector<1x128xf32>
    %282 = math.exp %281 : vector<1x128xf32>
    %cst_77 = arith.constant 1.000000e+00 : f32
    %283 = vector.broadcast %cst_77 : f32 to vector<1x128xf32>
    %284 = arith.addf %283, %282 : vector<1x128xf32>
    %285 = arith.divf %283, %284 : vector<1x128xf32>
    %286 = vector.extract_strided_slice %285 {offsets = [0, 0], sizes = [1, 32], strides = [1, 1]} : vector<1x128xf32> to vector<1x32xf32>
    %287 = vector.extract_strided_slice %285 {offsets = [0, 32], sizes = [1, 32], strides = [1, 1]} : vector<1x128xf32> to vector<1x32xf32>
    %288 = vector.extract_strided_slice %285 {offsets = [0, 64], sizes = [1, 32], strides = [1, 1]} : vector<1x128xf32> to vector<1x32xf32>
    %289 = vector.extract_strided_slice %280 {offsets = [0, 96], sizes = [1, 32], strides = [1, 1]} : vector<1x128xf32> to vector<1x32xf32>
    %290 = math.tanh %289 : vector<1x32xf32>
    %291 = arith.mulf %287, %253 : vector<1x32xf32>
    %292 = arith.mulf %286, %290 : vector<1x32xf32>
    %293 = arith.addf %291, %292 : vector<1x32xf32>
    %294 = math.tanh %293 : vector<1x32xf32>
    %295 = arith.mulf %288, %294 : vector<1x32xf32>
    %296 = arith.truncf %295 : vector<1x32xf32> to vector<1x32xbf16>
    %c6_78 = arith.constant 6 : index
    %c0_79 = arith.constant 0 : index
    %297 = vector.load %arg15[%c6_78, %c0_79] : memref<8x32xf32, #tpu.memory_space<vmem>>, vector<1x32xf32>
    tpu.vector_store %arg15[%c6_78, %c0_79], %295 {strides = array<i32>} : memref<8x32xf32, #tpu.memory_space<vmem>>, vector<1x32xf32>,
    %c7 = arith.constant 7 : index
    %c0_80 = arith.constant 0 : index
    %298 = vector.load %arg14[%c7, %c0_80] : memref<8x128xf32, #tpu.memory_space<vmem>>, vector<1x128xf32>
    %cst_81 = arith.constant dense<0.000000e+00> : vector<1x128xf32>
    %299 = tpu.matmul %276, %2, %cst_81 {dimension_numbers = #tpu.dot_dimension_numbers<[1], [0], [0], [1], [0, 0, 1, 1], [], []>} : vector<1x32xbf16>, vector<32x128xbf16>, vector<1x128xf32> -> vector<1x128xf32>
    %300 = arith.addf %298, %299 : vector<1x128xf32>
    %301 = arith.negf %300 : vector<1x128xf32>
    %302 = math.exp %301 : vector<1x128xf32>
    %cst_82 = arith.constant 1.000000e+00 : f32
    %303 = vector.broadcast %cst_82 : f32 to vector<1x128xf32>
    %304 = arith.addf %303, %302 : vector<1x128xf32>
    %305 = arith.divf %303, %304 : vector<1x128xf32>
    %306 = vector.extract_strided_slice %305 {offsets = [0, 0], sizes = [1, 32], strides = [1, 1]} : vector<1x128xf32> to vector<1x32xf32>
    %307 = vector.extract_strided_slice %305 {offsets = [0, 32], sizes = [1, 32], strides = [1, 1]} : vector<1x128xf32> to vector<1x32xf32>
    %308 = vector.extract_strided_slice %305 {offsets = [0, 64], sizes = [1, 32], strides = [1, 1]} : vector<1x128xf32> to vector<1x32xf32>
    %309 = vector.extract_strided_slice %300 {offsets = [0, 96], sizes = [1, 32], strides = [1, 1]} : vector<1x128xf32> to vector<1x32xf32>
    %310 = math.tanh %309 : vector<1x32xf32>
    %311 = arith.mulf %307, %273 : vector<1x32xf32>
    %312 = arith.mulf %306, %310 : vector<1x32xf32>
    %313 = arith.addf %311, %312 : vector<1x32xf32>
    %314 = math.tanh %313 : vector<1x32xf32>
    %315 = arith.mulf %308, %314 : vector<1x32xf32>
    %316 = arith.truncf %315 : vector<1x32xf32> to vector<1x32xbf16>
    %cst_83 = arith.constant dense<0.000000e+00> : vector<1x128xf32>
    %317 = tpu.matmul %316, %1, %cst_83 {dimension_numbers = #tpu.dot_dimension_numbers<[1], [0], [0], [1], [0, 0, 1, 1], [], []>} : vector<1x32xbf16>, vector<32x128xbf16>, vector<1x128xf32> -> vector<1x128xf32>
    %318 = arith.addf %317, %5 : vector<1x128xf32>
    %cst_84 = arith.constant dense<0.000000e+00> : vector<1x128xf32>
    %319 = tpu.matmul %296, %3, %cst_84 {dimension_numbers = #tpu.dot_dimension_numbers<[1], [0], [0], [1], [0, 0, 1, 1], [], []>} : vector<1x32xbf16>, vector<32x128xbf16>, vector<1x128xf32> -> vector<1x128xf32>
    %320 = arith.addf %318, %319 : vector<1x128xf32>
    %321 = arith.negf %320 : vector<1x128xf32>
    %322 = math.exp %321 : vector<1x128xf32>
    %cst_85 = arith.constant 1.000000e+00 : f32
    %323 = vector.broadcast %cst_85 : f32 to vector<1x128xf32>
    %324 = arith.addf %323, %322 : vector<1x128xf32>
    %325 = arith.divf %323, %324 : vector<1x128xf32>
    %326 = vector.extract_strided_slice %325 {offsets = [0, 0], sizes = [1, 32], strides = [1, 1]} : vector<1x128xf32> to vector<1x32xf32>
    %327 = vector.extract_strided_slice %325 {offsets = [0, 32], sizes = [1, 32], strides = [1, 1]} : vector<1x128xf32> to vector<1x32xf32>
    %328 = vector.extract_strided_slice %325 {offsets = [0, 64], sizes = [1, 32], strides = [1, 1]} : vector<1x128xf32> to vector<1x32xf32>
    %329 = vector.extract_strided_slice %320 {offsets = [0, 96], sizes = [1, 32], strides = [1, 1]} : vector<1x128xf32> to vector<1x32xf32>
    %330 = math.tanh %329 : vector<1x32xf32>
    %331 = arith.mulf %327, %293 : vector<1x32xf32>
    %332 = arith.mulf %326, %330 : vector<1x32xf32>
    %333 = arith.addf %331, %332 : vector<1x32xf32>
    %334 = math.tanh %333 : vector<1x32xf32>
    %335 = arith.mulf %328, %334 : vector<1x32xf32>
    %c7_86 = arith.constant 7 : index
    %c0_87 = arith.constant 0 : index
    %336 = vector.load %arg15[%c7_86, %c0_87] : memref<8x32xf32, #tpu.memory_space<vmem>>, vector<1x32xf32>
    tpu.vector_store %arg15[%c7_86, %c0_87], %335 {strides = array<i32>} : memref<8x32xf32, #tpu.memory_space<vmem>>, vector<1x32xf32>,
    %c0_88 = arith.constant 0 : index
    %c0_89 = arith.constant 0 : index
    %337 = vector.load %arg15[%c0_88, %c0_89] : memref<8x32xf32, #tpu.memory_space<vmem>>, vector<8x32xf32>
    %338 = arith.truncf %337 : vector<8x32xf32> to vector<8x32xbf16>
    %c0_90 = arith.constant 0 : index
    %c0_91 = arith.constant 0 : index
    %339 = vector.load %arg9[%c0_90, %c0_91] : memref<32x20xbf16, #tpu.memory_space<vmem>>, vector<32x20xbf16>
    %cst_92 = arith.constant dense<0.000000e+00> : vector<8x20xf32>
    %340 = tpu.matmul %338, %339, %cst_92 {dimension_numbers = #tpu.dot_dimension_numbers<[1], [0], [0], [1], [0, 0, 1, 1], [], []>} : vector<8x32xbf16>, vector<32x20xbf16>, vector<8x20xf32> -> vector<8x20xf32>
    %c0_93 = arith.constant 0 : index
    %c0_94 = arith.constant 0 : index
    %341 = vector.load %arg10[%c0_93, %c0_94] : memref<1x20xf32, #tpu.memory_space<vmem>>, vector<1x20xf32>
    %342 = vector.broadcast %341 : vector<1x20xf32> to vector<8x20xf32>
    %343 = arith.addf %340, %342 : vector<8x20xf32>
    %c0_95 = arith.constant 0 : index
    %c0_96 = arith.constant 0 : index
    %344 = vector.load %arg11[%c0_95, %c0_96] : memref<8x20xf32, #tpu.memory_space<vmem>>, vector<8x20xf32>
    tpu.vector_store %arg11[%c0_95, %c0_96], %343 {strides = array<i32>} : memref<8x20xf32, #tpu.memory_space<vmem>>, vector<8x20xf32>,
    %c0_97 = arith.constant 0 : index
    %c0_98 = arith.constant 0 : index
    %345 = vector.load %arg12[%c0_97, %c0_98] : memref<2x32xf32, #tpu.memory_space<vmem>>, vector<1x32xf32>
    tpu.vector_store %arg12[%c0_97, %c0_98], %315 {strides = array<i32>} : memref<2x32xf32, #tpu.memory_space<vmem>>, vector<1x32xf32>,
    %c0_99 = arith.constant 0 : index
    %c0_100 = arith.constant 0 : index
    %346 = vector.load %arg13[%c0_99, %c0_100] : memref<2x32xf32, #tpu.memory_space<vmem>>, vector<1x32xf32>
    tpu.vector_store %arg13[%c0_99, %c0_100], %313 {strides = array<i32>} : memref<2x32xf32, #tpu.memory_space<vmem>>, vector<1x32xf32>,
    %c1_101 = arith.constant 1 : index
    %c0_102 = arith.constant 0 : index
    %347 = vector.load %arg12[%c1_101, %c0_102] : memref<2x32xf32, #tpu.memory_space<vmem>>, vector<1x32xf32>
    tpu.vector_store %arg12[%c1_101, %c0_102], %335 {strides = array<i32>} : memref<2x32xf32, #tpu.memory_space<vmem>>, vector<1x32xf32>,
    %c1_103 = arith.constant 1 : index
    %c0_104 = arith.constant 0 : index
    %348 = vector.load %arg13[%c1_103, %c0_104] : memref<2x32xf32, #tpu.memory_space<vmem>>, vector<1x32xf32>
    tpu.vector_store %arg13[%c1_103, %c0_104], %333 {strides = array<i32>} : memref<2x32xf32, #tpu.memory_space<vmem>>, vector<1x32xf32>,
    return
  }
}

</mosaic_0001>

<llo_original>
// kernel: tpu_custom_call.1
$region0: #{tpu_custom_call.1}
  #allocation0 [shape = 'u32[]', space=smem, size = 0x4, offset = 0x4, fixed_abs, tag = 'smem constant byte address 0x4 - core index']
  #allocation1 [shape = 'u32[144,128]{1,0:T(1,128)}', space=vmem, size = 0x12000, scoped, tag = 'internal scratch']
  #allocation2 [shape = 'f32[8,128]{1,0:T(8,128)}', space=vmem, size = 0x1000, scoped, tag = 'scratch operand']
  #allocation3 [shape = 'f32[8,32]{1,0:T(8,128)}', space=vmem, size = 0x1000, scoped, tag = 'scratch operand']
  %s0 = inlined_call_operand.hbm [shape: f32[8,16], index: 0, kind: input, shape index: {}]
  %s1 = inlined_call_operand.hbm [shape: bf16[16,128], index: 1, kind: input, shape index: {}]
  %s2 = inlined_call_operand.vmem [shape: bf16[32,128], index: 2, kind: input, shape index: {}]
  %s3 = inlined_call_operand.vmem [shape: f32[1,128], index: 3, kind: input, shape index: {}]
  %s4 = inlined_call_operand.vmem [shape: bf16[32,128], index: 4, kind: input, shape index: {}]
  %s5 = inlined_call_operand.hbm [shape: bf16[32,128], index: 5, kind: input, shape index: {}]
  %s6 = inlined_call_operand.vmem [shape: f32[1,128], index: 6, kind: input, shape index: {}]
  %s7 = inlined_call_operand.vmem [shape: f32[2,32], index: 7, kind: input, shape index: {}]
  %s8 = inlined_call_operand.vmem [shape: f32[2,32], index: 8, kind: input, shape index: {}]
  %s9 = inlined_call_operand.vmem [shape: bf16[32,20], index: 9, kind: input, shape index: {}]
  %s10 = inlined_call_operand.vmem [shape: f32[1,20], index: 10, kind: input, shape index: {}]
  %s11 = inlined_call_operand.hbm [shape: f32[8,20], index: 11, kind: output, shape index: {0}]
  %s12 = inlined_call_operand.hbm [shape: f32[2,32], index: 12, kind: output, shape index: {1}]
  %s13 = inlined_call_operand.hbm [shape: f32[2,32], index: 13, kind: output, shape index: {2}]
  %14 = xla_tuple %s11, %s12, %s13
  %s15 = sld [smem:[#allocation0]]
  $region82: #{tpu_custom_call.1} parent=0
    _
  %s17 = ssub.s32 1, %s15
  %s18 = scalar_select 0, %s17, %s15
  $region1: #{tpu_custom_call.1} parent=0
    #allocation4 [shape = 'u8[4096]{0}', space=vmem, size = 0x1000, scoped, tag = 'input window, operand 0, single buffered']
    #allocation5 [shape = 's32[1]{0}', space=sflag, size = 0x4, scoped, tag = 'scoped memory for tpu_custom_call.1']
    #allocation6 [shape = 's32[1]{0}', space=sflag, size = 0x4, scoped, tag = 'scoped memory for tpu_custom_call.1']
    #allocation7 [shape = 'u8[4096]{0}', space=vmem, size = 0x1000, scoped, tag = 'input window, operand 1, single buffered']
    #allocation8 [shape = 's32[1]{0}', space=sflag, size = 0x4, scoped, tag = 'scoped memory for tpu_custom_call.1']
    #allocation9 [shape = 'u8[8192]{0}', space=vmem, size = 0x2000, scoped, tag = 'input window, operand 5, single buffered']
    #allocation10 [shape = 'u8[4096]{0}', space=vmem, size = 0x1000, scoped, tag = 'output window, operand 0, single buffered']
    #allocation11 [shape = 'u8[1024]{0}', space=vmem, size = 0x400, scoped, tag = 'output window, operand 1, single buffered']
    #allocation12 [shape = 's32[1]{0}', space=sflag, size = 0x4, scoped, tag = 'scoped memory for tpu_custom_call.1']
    #allocation13 [shape = 'u8[1024]{0}', space=vmem, size = 0x400, scoped, tag = 'output window, operand 2, single buffered']
    %19 = vsyncpa [#allocation5], 0
    %20 = vsyncpa [#allocation8], 0
    %21 = vsyncpa [#allocation6], 0
    %22 = vsyncpa [#allocation12], 0
    // Predicated region
    $region2: #{tpu_custom_call.1} parent=1 // pred_check
      _
    $region3: #{tpu_custom_call.1} parent=1 // pred_check_branch
      %24 = sbr.rel (0) target = $region5
    $region4: #{tpu_custom_call.1} parent=1 // pred_region
      %s26 = ssub.s32 128, 128
      %27 = vsyncadd [#allocation5], %s26
      %s29 = sshll.u32 [#allocation4], 4
      %s30 = int_to_ptr.vmem [resolvable:$true] %s29
      %32 = dma.hbm_to_vmem [thread:$0]  %s0, 128, %s30, [#allocation5]
    $region5: #{tpu_custom_call.1} parent=1 // pred_fallthru
      _
    // Predicated region
    $region6: #{tpu_custom_call.1} parent=1 // pred_check
      _
    $region7: #{tpu_custom_call.1} parent=1 // pred_check_branch
      %34 = sbr.rel (0) target = $region9
    $region8: #{tpu_custom_call.1} parent=1 // pred_region
      %s36 = ssub.s32 128, 128
      %37 = vsyncadd [#allocation8], %s36
      %s38 = sshll.u32 [#allocation7], 4
      %s39 = int_to_ptr.vmem [resolvable:$true] %s38
      %44 = dma.hbm_to_vmem [thread:$0]  %s1, 128, %s39, [#allocation8], 64, 64, 4
    $region9: #{tpu_custom_call.1} parent=1 // pred_fallthru
      _
    // Predicated region
    $region10: #{tpu_custom_call.1} parent=1 // pred_check
      _
    $region11: #{tpu_custom_call.1} parent=1 // pred_check_branch
      %46 = sbr.rel (0) target = $region13
    $region12: #{tpu_custom_call.1} parent=1 // pred_region
      _
    $region13: #{tpu_custom_call.1} parent=1 // pred_fallthru
      _
    // Predicated region
    $region14: #{tpu_custom_call.1} parent=1 // pred_check
      _
    $region15: #{tpu_custom_call.1} parent=1 // pred_check_branch
      %48 = sbr.rel (0) target = $region17
    $region16: #{tpu_custom_call.1} parent=1 // pred_region
      _
    $region17: #{tpu_custom_call.1} parent=1 // pred_fallthru
      _
    // Predicated region
    $region18: #{tpu_custom_call.1} parent=1 // pred_check
      _
    $region19: #{tpu_custom_call.1} parent=1 // pred_check_branch
      %50 = sbr.rel (0) target = $region21
    $region20: #{tpu_custom_call.1} parent=1 // pred_region
      _
    $region21: #{tpu_custom_call.1} parent=1 // pred_fallthru
      _
    // Predicated region
    $region22: #{tpu_custom_call.1} parent=1 // pred_check
      _
    $region23: #{tpu_custom_call.1} parent=1 // pred_check_branch
      %52 = sbr.rel (0) target = $region25
    $region24: #{tpu_custom_call.1} parent=1 // pred_region
      %s54 = ssub.s32 256, 256
      %55 = vsyncadd [#allocation8], %s54
      %s56 = sshll.u32 [#allocation9], 4
      %s57 = int_to_ptr.vmem [resolvable:$true] %s56
      %62 = dma.hbm_to_vmem [thread:$0]  %s5, 256, %s57, [#allocation8], 64, 64, 4
    $region25: #{tpu_custom_call.1} parent=1 // pred_fallthru
      _
    // Predicated region
    $region26: #{tpu_custom_call.1} parent=1 // pred_check
      _
    $region27: #{tpu_custom_call.1} parent=1 // pred_check_branch
      %64 = sbr.rel (0) target = $region29
    $region28: #{tpu_custom_call.1} parent=1 // pred_region
      _
    $region29: #{tpu_custom_call.1} parent=1 // pred_fallthru
      _
    // Predicated region
    $region30: #{tpu_custom_call.1} parent=1 // pred_check
      _
    $region31: #{tpu_custom_call.1} parent=1 // pred_check_branch
      %66 = sbr.rel (0) target = $region33
    $region32: #{tpu_custom_call.1} parent=1 // pred_region
      _
    $region33: #{tpu_custom_call.1} parent=1 // pred_fallthru
      _
    // Predicated region
    $region34: #{tpu_custom_call.1} parent=1 // pred_check
      _
    $region35: #{tpu_custom_call.1} parent=1 // pred_check_branch
      %68 = sbr.rel (0) target = $region37
    $region36: #{tpu_custom_call.1} parent=1 // pred_region
      _
    $region37: #{tpu_custom_call.1} parent=1 // pred_fallthru
      _
    // Predicated region
    $region38: #{tpu_custom_call.1} parent=1 // pred_check
      _
    $region39: #{tpu_custom_call.1} parent=1 // pred_check_branch
      %70 = sbr.rel (0) target = $region41
    $region40: #{tpu_custom_call.1} parent=1 // pred_region
      _
    $region41: #{tpu_custom_call.1} parent=1 // pred_fallthru
      _
    // Predicated region
    $region42: #{tpu_custom_call.1} parent=1 // pred_check
      _
    $region43: #{tpu_custom_call.1} parent=1 // pred_check_branch
      %72 = sbr.rel (0) target = $region45
    $region44: #{tpu_custom_call.1} parent=1 // pred_region
      _
    $region45: #{tpu_custom_call.1} parent=1 // pred_fallthru
      _
    // Predicated region
    $region46: #{tpu_custom_call.1} parent=1 // pred_check
      _
    $region47: #{tpu_custom_call.1} parent=1 // pred_check_branch
      %74 = sbr.rel (0) target = $region49
    $region48: #{tpu_custom_call.1} parent=1 // pred_region
      %75 = dma.done [#allocation5], 128
    $region49: #{tpu_custom_call.1} parent=1 // pred_fallthru
      _
    // Predicated region
    $region50: #{tpu_custom_call.1} parent=1 // pred_check
      _
    $region51: #{tpu_custom_call.1} parent=1 // pred_check_branch
      %77 = sbr.rel (0) target = $region53
    $region52: #{tpu_custom_call.1} parent=1 // pred_region
      %78 = dma.done [#allocation8], 128
    $region53: #{tpu_custom_call.1} parent=1 // pred_fallthru
      _
    // Predicated region
    $region54: #{tpu_custom_call.1} parent=1 // pred_check
      _
    $region55: #{tpu_custom_call.1} parent=1 // pred_check_branch
      %80 = sbr.rel (0) target = $region57
    $region56: #{tpu_custom_call.1} parent=1 // pred_region
      %81 = dma.done [#allocation8], 256
    $region57: #{tpu_custom_call.1} parent=1 // pred_fallthru
      _
    %v83 = vld [vmem:[#allocation7] sm:$0xf]
    %v84 = vld [vmem:[#allocation7 + $0x4] sm:$0xf]
    %v85 = vld [vmem:[%s4] sm:$0xf]
    %v86 = vld [vmem:[%s4 + $0x4] sm:$0xf]
    %v87 = vld [vmem:[%s4 + $0x8] sm:$0xf]
    %v88 = vld [vmem:[%s4 + $0xc] sm:$0xf]
    %v89 = vld [vmem:[%s2] sm:$0xf]
    %v90 = vld [vmem:[%s2 + $0x4] sm:$0xf]
    %v91 = vld [vmem:[%s2 + $0x8] sm:$0xf]
    %v92 = vld [vmem:[%s2 + $0xc] sm:$0xf]
    %v93 = vld [vmem:[#allocation9] sm:$0xf]
    %v94 = vld [vmem:[#allocation9 + $0x4] sm:$0xf]
    %v95 = vld [vmem:[#allocation9 + $0x8] sm:$0xf]
    %v96 = vld [vmem:[#allocation9 + $0xc] sm:$0xf]
    %v97 = vld [vmem:[%s3] sm:$0x1]
    %v98 = vld [vmem:[%s6] sm:$0x1]
    %v99 = vld [vmem:[#allocation4] sm:$0xff]
    %v100 = vpack.c.bf16 %v99, %v99
    %v102 = vlaneseq
    %v103 = vshrl.u32 %v102, 7
    %v104 = vsub.s32 0, %v103
    %v105 = vrot.slane %v97, %v104
    %v109 = vunpack.c.l.b16 %v83
    %v110 = vunpack.c.l.b16 %v84
    %v111 = vpack.c.b16 %v110, %v109
    %vm113 = vcmask 130048
    %v115 = vsel %vm113, %v100, 0
    %117 = vmatprep.subr.bf16.mxu0 0
    %118 = vmatpush1.bf16.msra.mxu0 %v111
    %119 = vmatprep.subr.bf16.mxu0 0
    %120 = vmatpush1.bf16.msra.mxu0 0
    %121 = vmatprep.subr.bf16.mxu0 0
    %122 = vmatpush1.bf16.msra.mxu0 0
    %123 = vmatprep.subr.bf16.mxu0 0
    %124 = vmatpush1.bf16.msra.mxu0 0
    %125 = vmatprep.subr.bf16.mxu0 0
    %126 = vmatpush1.bf16.msra.mxu0 0
    %127 = vmatprep.subr.bf16.mxu0 0
    %128 = vmatpush1.bf16.msra.mxu0 0
    %129 = vmatprep.subr.bf16.mxu0 0
    %130 = vmatpush1.bf16.msra.mxu0 0
    %131 = vmatprep.subr.bf16.mxu0 0
    %132 = vmatpush1.bf16.msra.mxu0 0
    %133 = vmatprep.subr.bf16.mxu0 0
    %134 = vmatpush1.bf16.msra.mxu0 0
    %135 = vmatprep.subr.bf16.mxu0 0
    %136 = vmatpush1.bf16.msra.mxu0 0
    %137 = vmatprep.subr.bf16.mxu0 0
    %138 = vmatpush1.bf16.msra.mxu0 0
    %139 = vmatprep.subr.bf16.mxu0 0
    %140 = vmatpush1.bf16.msra.mxu0 0
    %141 = vmatprep.subr.bf16.mxu0 0
    %142 = vmatpush1.bf16.msra.mxu0 0
    %143 = vmatprep.subr.bf16.mxu0 0
    %144 = vmatpush1.bf16.msra.mxu0 0
    %145 = vmatprep.subr.bf16.mxu0 0
    %146 = vmatpush1.bf16.msra.mxu0 0
    %147 = vmatprep.subr.bf16.mxu0 0
    %148 = vmatpush1.bf16.msra.mxu0 0
    %149 = vmatprep.mubr.bf16.mxu0 0
    %150 = vmatmul.mubr.bf16.gmra.mrb[0].mxu0 %v115
    %v151 = vpop.f32.mrb[0].mxu0
    %v152 = vadd.f32 %v105, %v151
    %v153 = vpop.f32.mrb[0].mxu0
    %v154 = vpop.f32.mrb[0].mxu0
    %v155 = vpop.f32.mrb[0].mxu0
    %156 = vdwg.mxu0
    %157 = vst [vmem:[#allocation2] sm:$0xff] %v152
    %v158 = vld [vmem:[%s7] sm:$0x1]
    %v159 = vld [vmem:[%s7 + $0x1] sm:$0x1]
    %v160 = vld [vmem:[%s8] sm:$0x1]
    %v161 = vld [vmem:[%s8 + $0x1] sm:$0x1]
    %v162 = vpack.c.bf16 %v158, %v158
    %v163 = vpack.c.bf16 %v159, %v159
    %v164 = vld [vmem:[#allocation2] sm:$0x1]
    %v169 = vunpack.c.l.b16 %v89
    %v170 = vunpack.c.l.b16 %v90
    %v171 = vunpack.c.l.b16 %v91
    %v172 = vunpack.c.l.b16 %v92
    %v173 = vpack.c.b16 %v170, %v169
    %v174 = vpack.c.b16 %v172, %v171
    %vm177 = vcmask 261120
    %v179 = vsel %vm177, %v162, 0
    %181 = vmatprep.subr.bf16.mxu0 0
    %182 = vmatpush1.bf16.msra.mxu0 %v173
    %183 = vmatprep.subr.bf16.mxu0 0
    %184 = vmatpush1.bf16.msra.mxu0 %v174
    %185 = vmatprep.subr.bf16.mxu0 0
    %186 = vmatpush1.bf16.msra.mxu0 0
    %187 = vmatprep.subr.bf16.mxu0 0
    %188 = vmatpush1.bf16.msra.mxu0 0
    %189 = vmatprep.subr.bf16.mxu0 0
    %190 = vmatpush1.bf16.msra.mxu0 0
    %191 = vmatprep.subr.bf16.mxu0 0
    %192 = vmatpush1.bf16.msra.mxu0 0
    %193 = vmatprep.subr.bf16.mxu0 0
    %194 = vmatpush1.bf16.msra.mxu0 0
    %195 = vmatprep.subr.bf16.mxu0 0
    %196 = vmatpush1.bf16.msra.mxu0 0
    %197 = vmatprep.subr.bf16.mxu0 0
    %198 = vmatpush1.bf16.msra.mxu0 0
    %199 = vmatprep.subr.bf16.mxu0 0
    %200 = vmatpush1.bf16.msra.mxu0 0
    %201 = vmatprep.subr.bf16.mxu0 0
    %202 = vmatpush1.bf16.msra.mxu0 0
    %203 = vmatprep.subr.bf16.mxu0 0
    %204 = vmatpush1.bf16.msra.mxu0 0
    %205 = vmatprep.subr.bf16.mxu0 0
    %206 = vmatpush1.bf16.msra.mxu0 0
    %207 = vmatprep.subr.bf16.mxu0 0
    %208 = vmatpush1.bf16.msra.mxu0 0
    %209 = vmatprep.subr.bf16.mxu0 0
    %210 = vmatpush1.bf16.msra.mxu0 0
    %211 = vmatprep.subr.bf16.mxu0 0
    %212 = vmatpush1.bf16.msra.mxu0 0
    %213 = vmatprep.mubr.bf16.mxu0 0
    %214 = vmatmul.mubr.bf16.gmra.mrb[0].mxu0 %v179
    %v215 = vpop.f32.mrb[0].mxu0
    %v216 = vadd.f32 0.0, %v215
    %v217 = vpop.f32.mrb[0].mxu0
    %v218 = vpop.f32.mrb[0].mxu0
    %v219 = vpop.f32.mrb[0].mxu0
    %220 = vdwg.mxu0
    %v221 = vadd.f32 %v164, %v216
    %v222 = vxor.u32 %v221, 2147483648
    %v223 = vmul.f32 %v222, 1.442695
    %v224 = vpow.pop %v223
    %v225 = vadd.f32 %v224, 1.0
    %v226 = vrcp.pop %v225
    %v227 = vmul.f32 1.0, %v226
    %v228 = vtanh.pop %v221
    %230 = vrot.lane.b32.xlu0 %v160, 32
    %v231 = vpop.permute.xlu0 %230
    %v233 = vmul.f32 %v227, %v231
    %235 = vrot.lane.b32.xlu0 %v228, 32
    %v236 = vpop.permute.xlu0 %235
    %v238 = vmul.f32 %v227, %v236
    %240 = vrot.lane.b32.xlu0 %v238, 32
    %v241 = vpop.permute.xlu0 %240
    %v243 = vadd.f32 %v233, %v241
    %v244 = vtanh.pop %v243
    %246 = vrot.lane.b32.xlu0 %v244, 32
    %v247 = vpop.permute.xlu0 %246
    %v249 = vmul.f32 %v227, %v247
    %v250 = vpack.c.bf16 %v249, %v249
    %252 = vrot.lane.b32.xlu0 %v250, 64
    %v253 = vpop.permute.xlu0 %252
    %v258 = vunpack.c.l.b16 %v85
    %v259 = vunpack.c.l.b16 %v86
    %v260 = vunpack.c.l.b16 %v87
    %v261 = vunpack.c.l.b16 %v88
    %v262 = vpack.c.b16 %v259, %v258
    %v263 = vpack.c.b16 %v261, %v260
    %v267 = vsel %vm177, %v253, 0
    %269 = vmatprep.subr.bf16.mxu0 0
    %270 = vmatpush1.bf16.msra.mxu0 %v262
    %271 = vmatprep.subr.bf16.mxu0 0
    %272 = vmatpush1.bf16.msra.mxu0 %v263
    %273 = vmatprep.subr.bf16.mxu0 0
    %274 = vmatpush1.bf16.msra.mxu0 0
    %275 = vmatprep.subr.bf16.mxu0 0
    %276 = vmatpush1.bf16.msra.mxu0 0
    %277 = vmatprep.subr.bf16.mxu0 0
    %278 = vmatpush1.bf16.msra.mxu0 0
    %279 = vmatprep.subr.bf16.mxu0 0
    %280 = vmatpush1.bf16.msra.mxu0 0
    %281 = vmatprep.subr.bf16.mxu0 0
    %282 = vmatpush1.bf16.msra.mxu0 0
    %283 = vmatprep.subr.bf16.mxu0 0
    %284 = vmatpush1.bf16.msra.mxu0 0
    %285 = vmatprep.subr.bf16.mxu0 0
    %286 = vmatpush1.bf16.msra.mxu0 0
    %287 = vmatprep.subr.bf16.mxu0 0
    %288 = vmatpush1.bf16.msra.mxu0 0
    %289 = vmatprep.subr.bf16.mxu0 0
    %290 = vmatpush1.bf16.msra.mxu0 0
    %291 = vmatprep.subr.bf16.mxu0 0
    %292 = vmatpush1.bf16.msra.mxu0 0
    %293 = vmatprep.subr.bf16.mxu0 0
    %294 = vmatpush1.bf16.msra.mxu0 0
    %295 = vmatprep.subr.bf16.mxu0 0
    %296 = vmatpush1.bf16.msra.mxu0 0
    %297 = vmatprep.subr.bf16.mxu0 0
    %298 = vmatpush1.bf16.msra.mxu0 0
    %299 = vmatprep.subr.bf16.mxu0 0
    %300 = vmatpush1.bf16.msra.mxu0 0
    %301 = vmatprep.mubr.bf16.mxu0 0
    %302 = vmatmul.mubr.bf16.gmra.mrb[0].mxu0 %v267
    %v303 = vpop.f32.mrb[0].mxu0
    %v304 = vadd.f32 %v98, %v303
    %v305 = vpop.f32.mrb[0].mxu0
    %v306 = vpop.f32.mrb[0].mxu0
    %v307 = vpop.f32.mrb[0].mxu0
    %308 = vdwg.mxu0
    %v313 = vunpack.c.l.b16 %v93
    %v314 = vunpack.c.l.b16 %v94
    %v315 = vunpack.c.l.b16 %v95
    %v316 = vunpack.c.l.b16 %v96
    %v317 = vpack.c.b16 %v314, %v313
    %v318 = vpack.c.b16 %v316, %v315
    %v322 = vsel %vm177, %v163, 0
    %324 = vmatprep.subr.bf16.mxu0 0
    %325 = vmatpush1.bf16.msra.mxu0 %v317
    %326 = vmatprep.subr.bf16.mxu0 0
    %327 = vmatpush1.bf16.msra.mxu0 %v318
    %328 = vmatprep.subr.bf16.mxu0 0
    %329 = vmatpush1.bf16.msra.mxu0 0
    %330 = vmatprep.subr.bf16.mxu0 0
    %331 = vmatpush1.bf16.msra.mxu0 0
    %332 = vmatprep.subr.bf16.mxu0 0
    %333 = vmatpush1.bf16.msra.mxu0 0
    %334 = vmatprep.subr.bf16.mxu0 0
    %335 = vmatpush1.bf16.msra.mxu0 0
    %336 = vmatprep.subr.bf16.mxu0 0
    %337 = vmatpush1.bf16.msra.mxu0 0
    %338 = vmatprep.subr.bf16.mxu0 0
    %339 = vmatpush1.bf16.msra.mxu0 0
    %340 = vmatprep.subr.bf16.mxu0 0
    %341 = vmatpush1.bf16.msra.mxu0 0
    %342 = vmatprep.subr.bf16.mxu0 0
    %343 = vmatpush1.bf16.msra.mxu0 0
    %344 = vmatprep.subr.bf16.mxu0 0
    %345 = vmatpush1.bf16.msra.mxu0 0
    %346 = vmatprep.subr.bf16.mxu0 0
    %347 = vmatpush1.bf16.msra.mxu0 0
    %348 = vmatprep.subr.bf16.mxu0 0
    %349 = vmatpush1.bf16.msra.mxu0 0
    %350 = vmatprep.subr.bf16.mxu0 0
    %351 = vmatpush1.bf16.msra.mxu0 0
    %352 = vmatprep.subr.bf16.mxu0 0
    %353 = vmatpush1.bf16.msra.mxu0 0
    %354 = vmatprep.subr.bf16.mxu0 0
    %355 = vmatpush1.bf16.msra.mxu0 0
    %356 = vmatprep.mubr.bf16.mxu0 0
    %357 = vmatmul.mubr.bf16.gmra.mrb[0].mxu0 %v322
    %v358 = vpop.f32.mrb[0].mxu0
    %v359 = vadd.f32 0.0, %v358
    %v360 = vpop.f32.mrb[0].mxu0
    %v361 = vpop.f32.mrb[0].mxu0
    %v362 = vpop.f32.mrb[0].mxu0
    %363 = vdwg.mxu0
    %v364 = vadd.f32 %v304, %v359
    %v365 = vxor.u32 %v364, 2147483648
    %v366 = vmul.f32 %v365, 1.442695
    %v367 = vpow.pop %v366
    %v368 = vadd.f32 %v367, 1.0
    %v369 = vrcp.pop %v368
    %v370 = vmul.f32 1.0, %v369
    %v371 = vtanh.pop %v364
    %373 = vrot.lane.b32.xlu0 %v161, 32
    %v374 = vpop.permute.xlu0 %373
    %v376 = vmul.f32 %v370, %v374
    %378 = vrot.lane.b32.xlu0 %v371, 32
    %v379 = vpop.permute.xlu0 %378
    %v381 = vmul.f32 %v370, %v379
    %383 = vrot.lane.b32.xlu0 %v381, 32
    %v384 = vpop.permute.xlu0 %383
    %v386 = vadd.f32 %v376, %v384
    %v387 = vtanh.pop %v386
    %389 = vrot.lane.b32.xlu0 %v387, 32
    %v390 = vpop.permute.xlu0 %389
    %v392 = vmul.f32 %v370, %v390
    %v393 = vpack.c.bf16 %v392, %v392
    %395 = vrot.lane.b32.xlu0 %v392, 64
    %v396 = vpop.permute.xlu0 %395
    %vm398 = vcmask 253952
    %399 = vst.msk [vmem:[#allocation3] sm:$0x1] %vm398, %v396
    %v400 = vld [vmem:[#allocation2 + $0x1] sm:$0x1]
    %401 = vmatprep.subr.bf16.mxu0 0
    %402 = vmatpush1.bf16.msra.mxu0 %v173
    %403 = vmatprep.subr.bf16.mxu0 0
    %404 = vmatpush1.bf16.msra.mxu0 %v174
    %405 = vmatprep.subr.bf16.mxu0 0
    %406 = vmatpush1.bf16.msra.mxu0 0
    %407 = vmatprep.subr.bf16.mxu0 0
    %408 = vmatpush1.bf16.msra.mxu0 0
    %409 = vmatprep.subr.bf16.mxu0 0
    %410 = vmatpush1.bf16.msra.mxu0 0
    %411 = vmatprep.subr.bf16.mxu0 0
    %412 = vmatpush1.bf16.msra.mxu0 0
    %413 = vmatprep.subr.bf16.mxu0 0
    %414 = vmatpush1.bf16.msra.mxu0 0
    %415 = vmatprep.subr.bf16.mxu0 0
    %416 = vmatpush1.bf16.msra.mxu0 0
    %417 = vmatprep.subr.bf16.mxu0 0
    %418 = vmatpush1.bf16.msra.mxu0 0
    %419 = vmatprep.subr.bf16.mxu0 0
    %420 = vmatpush1.bf16.msra.mxu0 0
    %421 = vmatprep.subr.bf16.mxu0 0
    %422 = vmatpush1.bf16.msra.mxu0 0
    %423 = vmatprep.subr.bf16.mxu0 0
    %424 = vmatpush1.bf16.msra.mxu0 0
    %425 = vmatprep.subr.bf16.mxu0 0
    %426 = vmatpush1.bf16.msra.mxu0 0
    %427 = vmatprep.subr.bf16.mxu0 0
    %428 = vmatpush1.bf16.msra.mxu0 0
    %429 = vmatprep.subr.bf16.mxu0 0
    %430 = vmatpush1.bf16.msra.mxu0 0
    %431 = vmatprep.subr.bf16.mxu0 0
    %432 = vmatpush1.bf16.msra.mxu0 0
    %433 = vmatprep.mubr.bf16.mxu0 0
    %434 = vmatmul.mubr.bf16.gmra.mrb[0].mxu0 %v267
    %v435 = vpop.f32.mrb[0].mxu0
    %v436 = vadd.f32 0.0, %v435
    %v437 = vpop.f32.mrb[0].mxu0
    %v438 = vpop.f32.mrb[0].mxu0
    %v439 = vpop.f32.mrb[0].mxu0
    %440 = vdwg.mxu0
    %v441 = vadd.f32 %v400, %v436
    %v442 = vxor.u32 %v441, 2147483648
    %v443 = vmul.f32 %v442, 1.442695
    %v444 = vpow.pop %v443
    %v445 = vadd.f32 %v444, 1.0
    %v446 = vrcp.pop %v445
    %v447 = vmul.f32 1.0, %v446
    %v448 = vtanh.pop %v441
    %v449 = vmul.f32 %v447, %v243
    %451 = vrot.lane.b32.xlu0 %v448, 32
    %v452 = vpop.permute.xlu0 %451
    %v454 = vmul.f32 %v447, %v452
    %456 = vrot.lane.b32.xlu0 %v454, 32
    %v457 = vpop.permute.xlu0 %456
    %v459 = vadd.f32 %v449, %v457
    %v460 = vtanh.pop %v459
    %462 = vrot.lane.b32.xlu0 %v460, 32
    %v463 = vpop.permute.xlu0 %462
    %v465 = vmul.f32 %v447, %v463
    %v466 = vpack.c.bf16 %v465, %v465
    %468 = vrot.lane.b32.xlu0 %v466, 64
    %v469 = vpop.permute.xlu0 %468
    %v471 = vsel %vm177, %v469, 0
    %473 = vmatprep.subr.bf16.mxu0 0
    %474 = vmatpush1.bf16.msra.mxu0 %v262
    %475 = vmatprep.subr.bf16.mxu0 0
    %476 = vmatpush1.bf16.msra.mxu0 %v263
    %477 = vmatprep.subr.bf16.mxu0 0
    %478 = vmatpush1.bf16.msra.mxu0 0
    %479 = vmatprep.subr.bf16.mxu0 0
    %480 = vmatpush1.bf16.msra.mxu0 0
    %481 = vmatprep.subr.bf16.mxu0 0
    %482 = vmatpush1.bf16.msra.mxu0 0
    %483 = vmatprep.subr.bf16.mxu0 0
    %484 = vmatpush1.bf16.msra.mxu0 0
    %485 = vmatprep.subr.bf16.mxu0 0
    %486 = vmatpush1.bf16.msra.mxu0 0
    %487 = vmatprep.subr.bf16.mxu0 0
    %488 = vmatpush1.bf16.msra.mxu0 0
    %489 = vmatprep.subr.bf16.mxu0 0
    %490 = vmatpush1.bf16.msra.mxu0 0
    %491 = vmatprep.subr.bf16.mxu0 0
    %492 = vmatpush1.bf16.msra.mxu0 0
    %493 = vmatprep.subr.bf16.mxu0 0
    %494 = vmatpush1.bf16.msra.mxu0 0
    %495 = vmatprep.subr.bf16.mxu0 0
    %496 = vmatpush1.bf16.msra.mxu0 0
    %497 = vmatprep.subr.bf16.mxu0 0
    %498 = vmatpush1.bf16.msra.mxu0 0
    %499 = vmatprep.subr.bf16.mxu0 0
    %500 = vmatpush1.bf16.msra.mxu0 0
    %501 = vmatprep.subr.bf16.mxu0 0
    %502 = vmatpush1.bf16.msra.mxu0 0
    %503 = vmatprep.subr.bf16.mxu0 0
    %504 = vmatpush1.bf16.msra.mxu0 0
    %505 = vmatprep.mubr.bf16.mxu0 0
    %506 = vmatmul.mubr.bf16.gmra.mrb[0].mxu0 %v471
    %v507 = vpop.f32.mrb[0].mxu0
    %v508 = vadd.f32 %v98, %v507
    %v509 = vpop.f32.mrb[0].mxu0
    %v510 = vpop.f32.mrb[0].mxu0
    %v511 = vpop.f32.mrb[0].mxu0
    %512 = vdwg.mxu0
    %514 = vrot.lane.b32.xlu0 %v393, 64
    %v515 = vpop.permute.xlu0 %514
    %v517 = vsel %vm177, %v515, 0
    %519 = vmatprep.subr.bf16.mxu0 0
    %520 = vmatpush1.bf16.msra.mxu0 %v317
    %521 = vmatprep.subr.bf16.mxu0 0
    %522 = vmatpush1.bf16.msra.mxu0 %v318
    %523 = vmatprep.subr.bf16.mxu0 0
    %524 = vmatpush1.bf16.msra.mxu0 0
    %525 = vmatprep.subr.bf16.mxu0 0
    %526 = vmatpush1.bf16.msra.mxu0 0
    %527 = vmatprep.subr.bf16.mxu0 0
    %528 = vmatpush1.bf16.msra.mxu0 0
    %529 = vmatprep.subr.bf16.mxu0 0
    %530 = vmatpush1.bf16.msra.mxu0 0
    %531 = vmatprep.subr.bf16.mxu0 0
    %532 = vmatpush1.bf16.msra.mxu0 0
    %533 = vmatprep.subr.bf16.mxu0 0
    %534 = vmatpush1.bf16.msra.mxu0 0
    %535 = vmatprep.subr.bf16.mxu0 0
    %536 = vmatpush1.bf16.msra.mxu0 0
    %537 = vmatprep.subr.bf16.mxu0 0
    %538 = vmatpush1.bf16.msra.mxu0 0
    %539 = vmatprep.subr.bf16.mxu0 0
    %540 = vmatpush1.bf16.msra.mxu0 0
    %541 = vmatprep.subr.bf16.mxu0 0
    %542 = vmatpush1.bf16.msra.mxu0 0
    %543 = vmatprep.subr.bf16.mxu0 0
    %544 = vmatpush1.bf16.msra.mxu0 0
    %545 = vmatprep.subr.bf16.mxu0 0
    %546 = vmatpush1.bf16.msra.mxu0 0
    %547 = vmatprep.subr.bf16.mxu0 0
    %548 = vmatpush1.bf16.msra.mxu0 0
    %549 = vmatprep.subr.bf16.mxu0 0
    %550 = vmatpush1.bf16.msra.mxu0 0
    %551 = vmatprep.mubr.bf16.mxu0 0
    %552 = vmatmul.mubr.bf16.gmra.mrb[0].mxu0 %v517
    %v553 = vpop.f32.mrb[0].mxu0
    %v554 = vadd.f32 0.0, %v553
    %v555 = vpop.f32.mrb[0].mxu0
    %v556 = vpop.f32.mrb[0].mxu0
    %v557 = vpop.f32.mrb[0].mxu0
    %558 = vdwg.mxu0
    %v559 = vadd.f32 %v508, %v554
    %v560 = vxor.u32 %v559, 2147483648
    %v561 = vmul.f32 %v560, 1.442695
    %v562 = vpow.pop %v561
    %v563 = vadd.f32 %v562, 1.0
    %v564 = vrcp.pop %v563
    %v565 = vmul.f32 1.0, %v564
    %v566 = vtanh.pop %v559
    %v567 = vmul.f32 %v565, %v386
    %569 = vrot.lane.b32.xlu0 %v566, 32
    %v570 = vpop.permute.xlu0 %569
    %v572 = vmul.f32 %v565, %v570
    %574 = vrot.lane.b32.xlu0 %v572, 32
    %v575 = vpop.permute.xlu0 %574
    %v577 = vadd.f32 %v567, %v575
    %v578 = vtanh.pop %v577
    %580 = vrot.lane.b32.xlu0 %v578, 32
    %v581 = vpop.permute.xlu0 %580
    %v583 = vmul.f32 %v565, %v581
    %v584 = vpack.c.bf16 %v583, %v583
    %586 = vrot.lane.b32.xlu0 %v583, 64
    %v587 = vpop.permute.xlu0 %586
    %589 = vst.msk [vmem:[#allocation3 + $0x1] sm:$0x1] %vm398, %v587
    %v590 = vld [vmem:[#allocation2 + $0x2] sm:$0x1]
    %591 = vmatprep.subr.bf16.mxu0 0
    %592 = vmatpush1.bf16.msra.mxu0 %v173
    %593 = vmatprep.subr.bf16.mxu0 0
    %594 = vmatpush1.bf16.msra.mxu0 %v174
    %595 = vmatprep.subr.bf16.mxu0 0
    %596 = vmatpush1.bf16.msra.mxu0 0
    %597 = vmatprep.subr.bf16.mxu0 0
    %598 = vmatpush1.bf16.msra.mxu0 0
    %599 = vmatprep.subr.bf16.mxu0 0
    %600 = vmatpush1.bf16.msra.mxu0 0
    %601 = vmatprep.subr.bf16.mxu0 0
    %602 = vmatpush1.bf16.msra.mxu0 0
    %603 = vmatprep.subr.bf16.mxu0 0
    %604 = vmatpush1.bf16.msra.mxu0 0
    %605 = vmatprep.subr.bf16.mxu0 0
    %606 = vmatpush1.bf16.msra.mxu0 0
    %607 = vmatprep.subr.bf16.mxu0 0
    %608 = vmatpush1.bf16.msra.mxu0 0
    %609 = vmatprep.subr.bf16.mxu0 0
    %610 = vmatpush1.bf16.msra.mxu0 0
    %611 = vmatprep.subr.bf16.mxu0 0
    %612 = vmatpush1.bf16.msra.mxu0 0
    %613 = vmatprep.subr.bf16.mxu0 0
    %614 = vmatpush1.bf16.msra.mxu0 0
    %615 = vmatprep.subr.bf16.mxu0 0
    %616 = vmatpush1.bf16.msra.mxu0 0
    %617 = vmatprep.subr.bf16.mxu0 0
    %618 = vmatpush1.bf16.msra.mxu0 0
    %619 = vmatprep.subr.bf16.mxu0 0
    %620 = vmatpush1.bf16.msra.mxu0 0
    %621 = vmatprep.subr.bf16.mxu0 0
    %622 = vmatpush1.bf16.msra.mxu0 0
    %623 = vmatprep.mubr.bf16.mxu0 0
    %624 = vmatmul.mubr.bf16.gmra.mrb[0].mxu0 %v471
    %v625 = vpop.f32.mrb[0].mxu0
    %v626 = vadd.f32 0.0, %v625
    %v627 = vpop.f32.mrb[0].mxu0
    %v628 = vpop.f32.mrb[0].mxu0
    %v629 = vpop.f32.mrb[0].mxu0
    %630 = vdwg.mxu0
    %v631 = vadd.f32 %v590, %v626
    %v632 = vxor.u32 %v631, 2147483648
    %v633 = vmul.f32 %v632, 1.442695
    %v634 = vpow.pop %v633
    %v635 = vadd.f32 %v634, 1.0
    %v636 = vrcp.pop %v635
    %v637 = vmul.f32 1.0, %v636
    %v638 = vtanh.pop %v631
    %v639 = vmul.f32 %v637, %v459
    %641 = vrot.lane.b32.xlu0 %v638, 32
    %v642 = vpop.permute.xlu0 %641
    %v644 = vmul.f32 %v637, %v642
    %646 = vrot.lane.b32.xlu0 %v644, 32
    %v647 = vpop.permute.xlu0 %646
    %v649 = vadd.f32 %v639, %v647
    %v650 = vtanh.pop %v649
    %652 = vrot.lane.b32.xlu0 %v650, 32
    %v653 = vpop.permute.xlu0 %652
    %v655 = vmul.f32 %v637, %v653
    %v656 = vpack.c.bf16 %v655, %v655
    %658 = vrot.lane.b32.xlu0 %v656, 64
    %v659 = vpop.permute.xlu0 %658
    %v661 = vsel %vm177, %v659, 0
    %663 = vmatprep.subr.bf16.mxu0 0
    %664 = vmatpush1.bf16.msra.mxu0 %v262
    %665 = vmatprep.subr.bf16.mxu0 0
    %666 = vmatpush1.bf16.msra.mxu0 %v263
    %667 = vmatprep.subr.bf16.mxu0 0
    %668 = vmatpush1.bf16.msra.mxu0 0
    %669 = vmatprep.subr.bf16.mxu0 0
    %670 = vmatpush1.bf16.msra.mxu0 0
    %671 = vmatprep.subr.bf16.mxu0 0
    %672 = vmatpush1.bf16.msra.mxu0 0
    %673 = vmatprep.subr.bf16.mxu0 0
    %674 = vmatpush1.bf16.msra.mxu0 0
    %675 = vmatprep.subr.bf16.mxu0 0
    %676 = vmatpush1.bf16.msra.mxu0 0
    %677 = vmatprep.subr.bf16.mxu0 0
    %678 = vmatpush1.bf16.msra.mxu0 0
    %679 = vmatprep.subr.bf16.mxu0 0
    %680 = vmatpush1.bf16.msra.mxu0 0
    %681 = vmatprep.subr.bf16.mxu0 0
    %682 = vmatpush1.bf16.msra.mxu0 0
    %683 = vmatprep.subr.bf16.mxu0 0
    %684 = vmatpush1.bf16.msra.mxu0 0
    %685 = vmatprep.subr.bf16.mxu0 0
    %686 = vmatpush1.bf16.msra.mxu0 0
    %687 = vmatprep.subr.bf16.mxu0 0
    %688 = vmatpush1.bf16.msra.mxu0 0
    %689 = vmatprep.subr.bf16.mxu0 0
    %690 = vmatpush1.bf16.msra.mxu0 0
    %691 = vmatprep.subr.bf16.mxu0 0
    %692 = vmatpush1.bf16.msra.mxu0 0
    %693 = vmatprep.subr.bf16.mxu0 0
    %694 = vmatpush1.bf16.msra.mxu0 0
    %695 = vmatprep.mubr.bf16.mxu0 0
    %696 = vmatmul.mubr.bf16.gmra.mrb[0].mxu0 %v661
    %v697 = vpop.f32.mrb[0].mxu0
    %v698 = vadd.f32 %v98, %v697
    %v699 = vpop.f32.mrb[0].mxu0
    %v700 = vpop.f32.mrb[0].mxu0
    %v701 = vpop.f32.mrb[0].mxu0
    %702 = vdwg.mxu0
    %704 = vrot.lane.b32.xlu0 %v584, 64
    %v705 = vpop.permute.xlu0 %704
    %v707 = vsel %vm177, %v705, 0
    %709 = vmatprep.subr.bf16.mxu0 0
    %710 = vmatpush1.bf16.msra.mxu0 %v317
    %711 = vmatprep.subr.bf16.mxu0 0
    %712 = vmatpush1.bf16.msra.mxu0 %v318
    %713 = vmatprep.subr.bf16.mxu0 0
    %714 = vmatpush1.bf16.msra.mxu0 0
    %715 = vmatprep.subr.bf16.mxu0 0
    %716 = vmatpush1.bf16.msra.mxu0 0
    %717 = vmatprep.subr.bf16.mxu0 0
    %718 = vmatpush1.bf16.msra.mxu0 0
    %719 = vmatprep.subr.bf16.mxu0 0
    %720 = vmatpush1.bf16.msra.mxu0 0
    %721 = vmatprep.subr.bf16.mxu0 0
    %722 = vmatpush1.bf16.msra.mxu0 0
    %723 = vmatprep.subr.bf16.mxu0 0
    %724 = vmatpush1.bf16.msra.mxu0 0
    %725 = vmatprep.subr.bf16.mxu0 0
    %726 = vmatpush1.bf16.msra.mxu0 0
    %727 = vmatprep.subr.bf16.mxu0 0
    %728 = vmatpush1.bf16.msra.mxu0 0
    %729 = vmatprep.subr.bf16.mxu0 0
    %730 = vmatpush1.bf16.msra.mxu0 0
    %731 = vmatprep.subr.bf16.mxu0 0
    %732 = vmatpush1.bf16.msra.mxu0 0
    %733 = vmatprep.subr.bf16.mxu0 0
    %734 = vmatpush1.bf16.msra.mxu0 0
    %735 = vmatprep.subr.bf16.mxu0 0
    %736 = vmatpush1.bf16.msra.mxu0 0
    %737 = vmatprep.subr.bf16.mxu0 0
    %738 = vmatpush1.bf16.msra.mxu0 0
    %739 = vmatprep.subr.bf16.mxu0 0
    %740 = vmatpush1.bf16.msra.mxu0 0
    %741 = vmatprep.mubr.bf16.mxu0 0
    %742 = vmatmul.mubr.bf16.gmra.mrb[0].mxu0 %v707
    %v743 = vpop.f32.mrb[0].mxu0
    %v744 = vadd.f32 0.0, %v743
    %v745 = vpop.f32.mrb[0].mxu0
    %v746 = vpop.f32.mrb[0].mxu0
    %v747 = vpop.f32.mrb[0].mxu0
    %748 = vdwg.mxu0
    %v749 = vadd.f32 %v698, %v744
    %v750 = vxor.u32 %v749, 2147483648
    %v751 = vmul.f32 %v750, 1.442695
    %v752 = vpow.pop %v751
    %v753 = vadd.f32 %v752, 1.0
    %v754 = vrcp.pop %v753
    %v755 = vmul.f32 1.0, %v754
    %v756 = vtanh.pop %v749
    %v757 = vmul.f32 %v755, %v577
    %759 = vrot.lane.b32.xlu0 %v756, 32
    %v760 = vpop.permute.xlu0 %759
    %v762 = vmul.f32 %v755, %v760
    %764 = vrot.lane.b32.xlu0 %v762, 32
    %v765 = vpop.permute.xlu0 %764
    %v767 = vadd.f32 %v757, %v765
    %v768 = vtanh.pop %v767
    %770 = vrot.lane.b32.xlu0 %v768, 32
    %v771 = vpop.permute.xlu0 %770
    %v773 = vmul.f32 %v755, %v771
    %v774 = vpack.c.bf16 %v773, %v773
    %776 = vrot.lane.b32.xlu0 %v773, 64
    %v777 = vpop.permute.xlu0 %776
    %779 = vst.msk [vmem:[#allocation3 + $0x2] sm:$0x1] %vm398, %v777
    %v780 = vld [vmem:[#allocation2 + $0x3] sm:$0x1]
    %781 = vmatprep.subr.bf16.mxu0 0
    %782 = vmatpush1.bf16.msra.mxu0 %v173
    %783 = vmatprep.subr.bf16.mxu0 0
    %784 = vmatpush1.bf16.msra.mxu0 %v174
    %785 = vmatprep.subr.bf16.mxu0 0
    %786 = vmatpush1.bf16.msra.mxu0 0
    %787 = vmatprep.subr.bf16.mxu0 0
    %788 = vmatpush1.bf16.msra.mxu0 0
    %789 = vmatprep.subr.bf16.mxu0 0
    %790 = vmatpush1.bf16.msra.mxu0 0
    %791 = vmatprep.subr.bf16.mxu0 0
    %792 = vmatpush1.bf16.msra.mxu0 0
    %793 = vmatprep.subr.bf16.mxu0 0
    %794 = vmatpush1.bf16.msra.mxu0 0
    %795 = vmatprep.subr.bf16.mxu0 0
    %796 = vmatpush1.bf16.msra.mxu0 0
    %797 = vmatprep.subr.bf16.mxu0 0
    %798 = vmatpush1.bf16.msra.mxu0 0
    %799 = vmatprep.subr.bf16.mxu0 0
    %800 = vmatpush1.bf16.msra.mxu0 0
    %801 = vmatprep.subr.bf16.mxu0 0
    %802 = vmatpush1.bf16.msra.mxu0 0
    %803 = vmatprep.subr.bf16.mxu0 0
    %804 = vmatpush1.bf16.msra.mxu0 0
    %805 = vmatprep.subr.bf16.mxu0 0
    %806 = vmatpush1.bf16.msra.mxu0 0
    %807 = vmatprep.subr.bf16.mxu0 0
    %808 = vmatpush1.bf16.msra.mxu0 0
    %809 = vmatprep.subr.bf16.mxu0 0
    %810 = vmatpush1.bf16.msra.mxu0 0
    %811 = vmatprep.subr.bf16.mxu0 0
    %812 = vmatpush1.bf16.msra.mxu0 0
    %813 = vmatprep.mubr.bf16.mxu0 0
    %814 = vmatmul.mubr.bf16.gmra.mrb[0].mxu0 %v661
    %v815 = vpop.f32.mrb[0].mxu0
    %v816 = vadd.f32 0.0, %v815
    %v817 = vpop.f32.mrb[0].mxu0
    %v818 = vpop.f32.mrb[0].mxu0
    %v819 = vpop.f32.mrb[0].mxu0
    %820 = vdwg.mxu0
    %v821 = vadd.f32 %v780, %v816
    %v822 = vxor.u32 %v821, 2147483648
    %v823 = vmul.f32 %v822, 1.442695
    %v824 = vpow.pop %v823
    %v825 = vadd.f32 %v824, 1.0
    %v826 = vrcp.pop %v825
    %v827 = vmul.f32 1.0, %v826
    %v828 = vtanh.pop %v821
    %v829 = vmul.f32 %v827, %v649
    %831 = vrot.lane.b32.xlu0 %v828, 32
    %v832 = vpop.permute.xlu0 %831
    %v834 = vmul.f32 %v827, %v832
    %836 = vrot.lane.b32.xlu0 %v834, 32
    %v837 = vpop.permute.xlu0 %836
    %v839 = vadd.f32 %v829, %v837
    %v840 = vtanh.pop %v839
    %842 = vrot.lane.b32.xlu0 %v840, 32
    %v843 = vpop.permute.xlu0 %842
    %v845 = vmul.f32 %v827, %v843
    %v846 = vpack.c.bf16 %v845, %v845
    %848 = vrot.lane.b32.xlu0 %v846, 64
    %v849 = vpop.permute.xlu0 %848
    %v851 = vsel %vm177, %v849, 0
    %853 = vmatprep.subr.bf16.mxu0 0
    %854 = vmatpush1.bf16.msra.mxu0 %v262
    %855 = vmatprep.subr.bf16.mxu0 0
    %856 = vmatpush1.bf16.msra.mxu0 %v263
    %857 = vmatprep.subr.bf16.mxu0 0
    %858 = vmatpush1.bf16.msra.mxu0 0
    %859 = vmatprep.subr.bf16.mxu0 0
    %860 = vmatpush1.bf16.msra.mxu0 0
    %861 = vmatprep.subr.bf16.mxu0 0
    %862 = vmatpush1.bf16.msra.mxu0 0
    %863 = vmatprep.subr.bf16.mxu0 0
    %864 = vmatpush1.bf16.msra.mxu0 0
    %865 = vmatprep.subr.bf16.mxu0 0
    %866 = vmatpush1.bf16.msra.mxu0 0
    %867 = vmatprep.subr.bf16.mxu0 0
    %868 = vmatpush1.bf16.msra.mxu0 0
    %869 = vmatprep.subr.bf16.mxu0 0
    %870 = vmatpush1.bf16.msra.mxu0 0
    %871 = vmatprep.subr.bf16.mxu0 0
    %872 = vmatpush1.bf16.msra.mxu0 0
    %873 = vmatprep.subr.bf16.mxu0 0
    %874 = vmatpush1.bf16.msra.mxu0 0
    %875 = vmatprep.subr.bf16.mxu0 0
    %876 = vmatpush1.bf16.msra.mxu0 0
    %877 = vmatprep.subr.bf16.mxu0 0
    %878 = vmatpush1.bf16.msra.mxu0 0
    %879 = vmatprep.subr.bf16.mxu0 0
    %880 = vmatpush1.bf16.msra.mxu0 0
    %881 = vmatprep.subr.bf16.mxu0 0
    %882 = vmatpush1.bf16.msra.mxu0 0
    %883 = vmatprep.subr.bf16.mxu0 0
    %884 = vmatpush1.bf16.msra.mxu0 0
    %885 = vmatprep.mubr.bf16.mxu0 0
    %886 = vmatmul.mubr.bf16.gmra.mrb[0].mxu0 %v851
    %v887 = vpop.f32.mrb[0].mxu0
    %v888 = vadd.f32 %v98, %v887
    %v889 = vpop.f32.mrb[0].mxu0
    %v890 = vpop.f32.mrb[0].mxu0
    %v891 = vpop.f32.mrb[0].mxu0
    %892 = vdwg.mxu0
    %894 = vrot.lane.b32.xlu0 %v774, 64
    %v895 = vpop.permute.xlu0 %894
    %v897 = vsel %vm177, %v895, 0
    %899 = vmatprep.subr.bf16.mxu0 0
    %900 = vmatpush1.bf16.msra.mxu0 %v317
    %901 = vmatprep.subr.bf16.mxu0 0
    %902 = vmatpush1.bf16.msra.mxu0 %v318
    %903 = vmatprep.subr.bf16.mxu0 0
    %904 = vmatpush1.bf16.msra.mxu0 0
    %905 = vmatprep.subr.bf16.mxu0 0
    %906 = vmatpush1.bf16.msra.mxu0 0
    %907 = vmatprep.subr.bf16.mxu0 0
    %908 = vmatpush1.bf16.msra.mxu0 0
    %909 = vmatprep.subr.bf16.mxu0 0
    %910 = vmatpush1.bf16.msra.mxu0 0
    %911 = vmatprep.subr.bf16.mxu0 0
    %912 = vmatpush1.bf16.msra.mxu0 0
    %913 = vmatprep.subr.bf16.mxu0 0
    %914 = vmatpush1.bf16.msra.mxu0 0
    %915 = vmatprep.subr.bf16.mxu0 0
    %916 = vmatpush1.bf16.msra.mxu0 0
    %917 = vmatprep.subr.bf16.mxu0 0
    %918 = vmatpush1.bf16.msra.mxu0 0
    %919 = vmatprep.subr.bf16.mxu0 0
    %920 = vmatpush1.bf16.msra.mxu0 0
    %921 = vmatprep.subr.bf16.mxu0 0
    %922 = vmatpush1.bf16.msra.mxu0 0
    %923 = vmatprep.subr.bf16.mxu0 0
    %924 = vmatpush1.bf16.msra.mxu0 0
    %925 = vmatprep.subr.bf16.mxu0 0
    %926 = vmatpush1.bf16.msra.mxu0 0
    %927 = vmatprep.subr.bf16.mxu0 0
    %928 = vmatpush1.bf16.msra.mxu0 0
    %929 = vmatprep.subr.bf16.mxu0 0
    %930 = vmatpush1.bf16.msra.mxu0 0
    %931 = vmatprep.mubr.bf16.mxu0 0
    %932 = vmatmul.mubr.bf16.gmra.mrb[0].mxu0 %v897
    %v933 = vpop.f32.mrb[0].mxu0
    %v934 = vadd.f32 0.0, %v933
    %v935 = vpop.f32.mrb[0].mxu0
    %v936 = vpop.f32.mrb[0].mxu0
    %v937 = vpop.f32.mrb[0].mxu0
    %938 = vdwg.mxu0
    %v939 = vadd.f32 %v888, %v934
    %v940 = vxor.u32 %v939, 2147483648
    %v941 = vmul.f32 %v940, 1.442695
    %v942 = vpow.pop %v941
    %v943 = vadd.f32 %v942, 1.0
    %v944 = vrcp.pop %v943
    %v945 = vmul.f32 1.0, %v944
    %v946 = vtanh.pop %v939
    %v947 = vmul.f32 %v945, %v767
    %949 = vrot.lane.b32.xlu0 %v946, 32
    %v950 = vpop.permute.xlu0 %949
    %v952 = vmul.f32 %v945, %v950
    %954 = vrot.lane.b32.xlu0 %v952, 32
    %v955 = vpop.permute.xlu0 %954
    %v957 = vadd.f32 %v947, %v955
    %v958 = vtanh.pop %v957
    %960 = vrot.lane.b32.xlu0 %v958, 32
    %v961 = vpop.permute.xlu0 %960
    %v963 = vmul.f32 %v945, %v961
    %v964 = vpack.c.bf16 %v963, %v963
    %966 = vrot.lane.b32.xlu0 %v963, 64
    %v967 = vpop.permute.xlu0 %966
    %969 = vst.msk [vmem:[#allocation3 + $0x3] sm:$0x1] %vm398, %v967
    %v970 = vld [vmem:[#allocation2 + $0x4] sm:$0x1]
    %971 = vmatprep.subr.bf16.mxu0 0
    %972 = vmatpush1.bf16.msra.mxu0 %v173
    %973 = vmatprep.subr.bf16.mxu0 0
    %974 = vmatpush1.bf16.msra.mxu0 %v174
    %975 = vmatprep.subr.bf16.mxu0 0
    %976 = vmatpush1.bf16.msra.mxu0 0
    %977 = vmatprep.subr.bf16.mxu0 0
    %978 = vmatpush1.bf16.msra.mxu0 0
    %979 = vmatprep.subr.bf16.mxu0 0
    %980 = vmatpush1.bf16.msra.mxu0 0
    %981 = vmatprep.subr.bf16.mxu0 0
    %982 = vmatpush1.bf16.msra.mxu0 0
    %983 = vmatprep.subr.bf16.mxu0 0
    %984 = vmatpush1.bf16.msra.mxu0 0
    %985 = vmatprep.subr.bf16.mxu0 0
    %986 = vmatpush1.bf16.msra.mxu0 0
    %987 = vmatprep.subr.bf16.mxu0 0
    %988 = vmatpush1.bf16.msra.mxu0 0
    %989 = vmatprep.subr.bf16.mxu0 0
    %990 = vmatpush1.bf16.msra.mxu0 0
    %991 = vmatprep.subr.bf16.mxu0 0
    %992 = vmatpush1.bf16.msra.mxu0 0
    %993 = vmatprep.subr.bf16.mxu0 0
    %994 = vmatpush1.bf16.msra.mxu0 0
    %995 = vmatprep.subr.bf16.mxu0 0
    %996 = vmatpush1.bf16.msra.mxu0 0
    %997 = vmatprep.subr.bf16.mxu0 0
    %998 = vmatpush1.bf16.msra.mxu0 0
    %999 = vmatprep.subr.bf16.mxu0 0
    %1000 = vmatpush1.bf16.msra.mxu0 0
    %1001 = vmatprep.subr.bf16.mxu0 0
    %1002 = vmatpush1.bf16.msra.mxu0 0
    %1003 = vmatprep.mubr.bf16.mxu0 0
    %1004 = vmatmul.mubr.bf16.gmra.mrb[0].mxu0 %v851
    %v1005 = vpop.f32.mrb[0].mxu0
    %v1006 = vadd.f32 0.0, %v1005
    %v1007 = vpop.f32.mrb[0].mxu0
    %v1008 = vpop.f32.mrb[0].mxu0
    %v1009 = vpop.f32.mrb[0].mxu0
    %1010 = vdwg.mxu0
    %v1011 = vadd.f32 %v970, %v1006
    %v1012 = vxor.u32 %v1011, 2147483648
    %v1013 = vmul.f32 %v1012, 1.442695
    %v1014 = vpow.pop %v1013
    %v1015 = vadd.f32 %v1014, 1.0
    %v1016 = vrcp.pop %v1015
    %v1017 = vmul.f32 1.0, %v1016
    %v1018 = vtanh.pop %v1011
    %v1019 = vmul.f32 %v1017, %v839
    %1021 = vrot.lane.b32.xlu0 %v1018, 32
    %v1022 = vpop.permute.xlu0 %1021
    %v1024 = vmul.f32 %v1017, %v1022
    %1026 = vrot.lane.b32.xlu0 %v1024, 32
    %v1027 = vpop.permute.xlu0 %1026
    %v1029 = vadd.f32 %v1019, %v1027
    %v1030 = vtanh.pop %v1029
    %1032 = vrot.lane.b32.xlu0 %v1030, 32
    %v1033 = vpop.permute.xlu0 %1032
    %v1035 = vmul.f32 %v1017, %v1033
    %v1036 = vpack.c.bf16 %v1035, %v1035
    %1038 = vrot.lane.b32.xlu0 %v1036, 64
    %v1039 = vpop.permute.xlu0 %1038
    %v1041 = vsel %vm177, %v1039, 0
    %1043 = vmatprep.subr.bf16.mxu0 0
    %1044 = vmatpush1.bf16.msra.mxu0 %v262
    %1045 = vmatprep.subr.bf16.mxu0 0
    %1046 = vmatpush1.bf16.msra.mxu0 %v263
    %1047 = vmatprep.subr.bf16.mxu0 0
    %1048 = vmatpush1.bf16.msra.mxu0 0
    %1049 = vmatprep.subr.bf16.mxu0 0
    %1050 = vmatpush1.bf16.msra.mxu0 0
    %1051 = vmatprep.subr.bf16.mxu0 0
    %1052 = vmatpush1.bf16.msra.mxu0 0
    %1053 = vmatprep.subr.bf16.mxu0 0
    %1054 = vmatpush1.bf16.msra.mxu0 0
    %1055 = vmatprep.subr.bf16.mxu0 0
    %1056 = vmatpush1.bf16.msra.mxu0 0
    %1057 = vmatprep.subr.bf16.mxu0 0
    %1058 = vmatpush1.bf16.msra.mxu0 0
    %1059 = vmatprep.subr.bf16.mxu0 0
    %1060 = vmatpush1.bf16.msra.mxu0 0
    %1061 = vmatprep.subr.bf16.mxu0 0
    %1062 = vmatpush1.bf16.msra.mxu0 0
    %1063 = vmatprep.subr.bf16.mxu0 0
    %1064 = vmatpush1.bf16.msra.mxu0 0
    %1065 = vmatprep.subr.bf16.mxu0 0
    %1066 = vmatpush1.bf16.msra.mxu0 0
    %1067 = vmatprep.subr.bf16.mxu0 0
    %1068 = vmatpush1.bf16.msra.mxu0 0
    %1069 = vmatprep.subr.bf16.mxu0 0
    %1070 = vmatpush1.bf16.msra.mxu0 0
    %1071 = vmatprep.subr.bf16.mxu0 0
    %1072 = vmatpush1.bf16.msra.mxu0 0
    %1073 = vmatprep.subr.bf16.mxu0 0
    %1074 = vmatpush1.bf16.msra.mxu0 0
    %1075 = vmatprep.mubr.bf16.mxu0 0
    %1076 = vmatmul.mubr.bf16.gmra.mrb[0].mxu0 %v1041
    %v1077 = vpop.f32.mrb[0].mxu0
    %v1078 = vadd.f32 %v98, %v1077
    %v1079 = vpop.f32.mrb[0].mxu0
    %v1080 = vpop.f32.mrb[0].mxu0
    %v1081 = vpop.f32.mrb[0].mxu0
    %1082 = vdwg.mxu0
    %1084 = vrot.lane.b32.xlu0 %v964, 64
    %v1085 = vpop.permute.xlu0 %1084
    %v1087 = vsel %vm177, %v1085, 0
    %1089 = vmatprep.subr.bf16.mxu0 0
    %1090 = vmatpush1.bf16.msra.mxu0 %v317
    %1091 = vmatprep.subr.bf16.mxu0 0
    %1092 = vmatpush1.bf16.msra.mxu0 %v318
    %1093 = vmatprep.subr.bf16.mxu0 0
    %1094 = vmatpush1.bf16.msra.mxu0 0
    %1095 = vmatprep.subr.bf16.mxu0 0
    %1096 = vmatpush1.bf16.msra.mxu0 0
    %1097 = vmatprep.subr.bf16.mxu0 0
    %1098 = vmatpush1.bf16.msra.mxu0 0
    %1099 = vmatprep.subr.bf16.mxu0 0
    %1100 = vmatpush1.bf16.msra.mxu0 0
    %1101 = vmatprep.subr.bf16.mxu0 0
    %1102 = vmatpush1.bf16.msra.mxu0 0
    %1103 = vmatprep.subr.bf16.mxu0 0
    %1104 = vmatpush1.bf16.msra.mxu0 0
    %1105 = vmatprep.subr.bf16.mxu0 0
    %1106 = vmatpush1.bf16.msra.mxu0 0
    %1107 = vmatprep.subr.bf16.mxu0 0
    %1108 = vmatpush1.bf16.msra.mxu0 0
    %1109 = vmatprep.subr.bf16.mxu0 0
    %1110 = vmatpush1.bf16.msra.mxu0 0
    %1111 = vmatprep.subr.bf16.mxu0 0
    %1112 = vmatpush1.bf16.msra.mxu0 0
    %1113 = vmatprep.subr.bf16.mxu0 0
    %1114 = vmatpush1.bf16.msra.mxu0 0
    %1115 = vmatprep.subr.bf16.mxu0 0
    %1116 = vmatpush1.bf16.msra.mxu0 0
    %1117 = vmatprep.subr.bf16.mxu0 0
    %1118 = vmatpush1.bf16.msra.mxu0 0
    %1119 = vmatprep.subr.bf16.mxu0 0
    %1120 = vmatpush1.bf16.msra.mxu0 0
    %1121 = vmatprep.mubr.bf16.mxu0 0
    %1122 = vmatmul.mubr.bf16.gmra.mrb[0].mxu0 %v1087
    %v1123 = vpop.f32.mrb[0].mxu0
    %v1124 = vadd.f32 0.0, %v1123
    %v1125 = vpop.f32.mrb[0].mxu0
    %v1126 = vpop.f32.mrb[0].mxu0
    %v1127 = vpop.f32.mrb[0].mxu0
    %1128 = vdwg.mxu0
    %v1129 = vadd.f32 %v1078, %v1124
    %v1130 = vxor.u32 %v1129, 2147483648
    %v1131 = vmul.f32 %v1130, 1.442695
    %v1132 = vpow.pop %v1131
    %v1133 = vadd.f32 %v1132, 1.0
    %v1134 = vrcp.pop %v1133
    %v1135 = vmul.f32 1.0, %v1134
    %v1136 = vtanh.pop %v1129
    %v1137 = vmul.f32 %v1135, %v957
    %1139 = vrot.lane.b32.xlu0 %v1136, 32
    %v1140 = vpop.permute.xlu0 %1139
    %v1142 = vmul.f32 %v1135, %v1140
    %1144 = vrot.lane.b32.xlu0 %v1142, 32
    %v1145 = vpop.permute.xlu0 %1144
    %v1147 = vadd.f32 %v1137, %v1145
    %v1148 = vtanh.pop %v1147
    %1150 = vrot.lane.b32.xlu0 %v1148, 32
    %v1151 = vpop.permute.xlu0 %1150
    %v1153 = vmul.f32 %v1135, %v1151
    %v1154 = vpack.c.bf16 %v1153, %v1153
    %1156 = vrot.lane.b32.xlu0 %v1153, 64
    %v1157 = vpop.permute.xlu0 %1156
    %1159 = vst.msk [vmem:[#allocation3 + $0x4] sm:$0x1] %vm398, %v1157
    %v1160 = vld [vmem:[#allocation2 + $0x5] sm:$0x1]
    %1161 = vmatprep.subr.bf16.mxu0 0
    %1162 = vmatpush1.bf16.msra.mxu0 %v173
    %1163 = vmatprep.subr.bf16.mxu0 0
    %1164 = vmatpush1.bf16.msra.mxu0 %v174
    %1165 = vmatprep.subr.bf16.mxu0 0
    %1166 = vmatpush1.bf16.msra.mxu0 0
    %1167 = vmatprep.subr.bf16.mxu0 0
    %1168 = vmatpush1.bf16.msra.mxu0 0
    %1169 = vmatprep.subr.bf16.mxu0 0
    %1170 = vmatpush1.bf16.msra.mxu0 0
    %1171 = vmatprep.subr.bf16.mxu0 0
    %1172 = vmatpush1.bf16.msra.mxu0 0
    %1173 = vmatprep.subr.bf16.mxu0 0
    %1174 = vmatpush1.bf16.msra.mxu0 0
    %1175 = vmatprep.subr.bf16.mxu0 0
    %1176 = vmatpush1.bf16.msra.mxu0 0
    %1177 = vmatprep.subr.bf16.mxu0 0
    %1178 = vmatpush1.bf16.msra.mxu0 0
    %1179 = vmatprep.subr.bf16.mxu0 0
    %1180 = vmatpush1.bf16.msra.mxu0 0
    %1181 = vmatprep.subr.bf16.mxu0 0
    %1182 = vmatpush1.bf16.msra.mxu0 0
    %1183 = vmatprep.subr.bf16.mxu0 0
    %1184 = vmatpush1.bf16.msra.mxu0 0
    %1185 = vmatprep.subr.bf16.mxu0 0
    %1186 = vmatpush1.bf16.msra.mxu0 0
    %1187 = vmatprep.subr.bf16.mxu0 0
    %1188 = vmatpush1.bf16.msra.mxu0 0
    %1189 = vmatprep.subr.bf16.mxu0 0
    %1190 = vmatpush1.bf16.msra.mxu0 0
    %1191 = vmatprep.subr.bf16.mxu0 0
    %1192 = vmatpush1.bf16.msra.mxu0 0
    %1193 = vmatprep.mubr.bf16.mxu0 0
    %1194 = vmatmul.mubr.bf16.gmra.mrb[0].mxu0 %v1041
    %v1195 = vpop.f32.mrb[0].mxu0
    %v1196 = vadd.f32 0.0, %v1195
    %v1197 = vpop.f32.mrb[0].mxu0
    %v1198 = vpop.f32.mrb[0].mxu0
    %v1199 = vpop.f32.mrb[0].mxu0
    %1200 = vdwg.mxu0
    %v1201 = vadd.f32 %v1160, %v1196
    %v1202 = vxor.u32 %v1201, 2147483648
    %v1203 = vmul.f32 %v1202, 1.442695
    %v1204 = vpow.pop %v1203
    %v1205 = vadd.f32 %v1204, 1.0
    %v1206 = vrcp.pop %v1205
    %v1207 = vmul.f32 1.0, %v1206
    %v1208 = vtanh.pop %v1201
    %v1209 = vmul.f32 %v1207, %v1029
    %1211 = vrot.lane.b32.xlu0 %v1208, 32
    %v1212 = vpop.permute.xlu0 %1211
    %v1214 = vmul.f32 %v1207, %v1212
    %1216 = vrot.lane.b32.xlu0 %v1214, 32
    %v1217 = vpop.permute.xlu0 %1216
    %v1219 = vadd.f32 %v1209, %v1217
    %v1220 = vtanh.pop %v1219
    %1222 = vrot.lane.b32.xlu0 %v1220, 32
    %v1223 = vpop.permute.xlu0 %1222
    %v1225 = vmul.f32 %v1207, %v1223
    %v1226 = vpack.c.bf16 %v1225, %v1225
    %1228 = vrot.lane.b32.xlu0 %v1226, 64
    %v1229 = vpop.permute.xlu0 %1228
    %v1231 = vsel %vm177, %v1229, 0
    %1233 = vmatprep.subr.bf16.mxu0 0
    %1234 = vmatpush1.bf16.msra.mxu0 %v262
    %1235 = vmatprep.subr.bf16.mxu0 0
    %1236 = vmatpush1.bf16.msra.mxu0 %v263
    %1237 = vmatprep.subr.bf16.mxu0 0
    %1238 = vmatpush1.bf16.msra.mxu0 0
    %1239 = vmatprep.subr.bf16.mxu0 0
    %1240 = vmatpush1.bf16.msra.mxu0 0
    %1241 = vmatprep.subr.bf16.mxu0 0
    %1242 = vmatpush1.bf16.msra.mxu0 0
    %1243 = vmatprep.subr.bf16.mxu0 0
    %1244 = vmatpush1.bf16.msra.mxu0 0
    %1245 = vmatprep.subr.bf16.mxu0 0
    %1246 = vmatpush1.bf16.msra.mxu0 0
    %1247 = vmatprep.subr.bf16.mxu0 0
    %1248 = vmatpush1.bf16.msra.mxu0 0
    %1249 = vmatprep.subr.bf16.mxu0 0
    %1250 = vmatpush1.bf16.msra.mxu0 0
    %1251 = vmatprep.subr.bf16.mxu0 0
    %1252 = vmatpush1.bf16.msra.mxu0 0
    %1253 = vmatprep.subr.bf16.mxu0 0
    %1254 = vmatpush1.bf16.msra.mxu0 0
    %1255 = vmatprep.subr.bf16.mxu0 0
    %1256 = vmatpush1.bf16.msra.mxu0 0
    %1257 = vmatprep.subr.bf16.mxu0 0
    %1258 = vmatpush1.bf16.msra.mxu0 0
    %1259 = vmatprep.subr.bf16.mxu0 0
    %1260 = vmatpush1.bf16.msra.mxu0 0
    %1261 = vmatprep.subr.bf16.mxu0 0
    %1262 = vmatpush1.bf16.msra.mxu0 0
    %1263 = vmatprep.subr.bf16.mxu0 0
    %1264 = vmatpush1.bf16.msra.mxu0 0
    %1265 = vmatprep.mubr.bf16.mxu0 0
    %1266 = vmatmul.mubr.bf16.gmra.mrb[0].mxu0 %v1231
    %v1267 = vpop.f32.mrb[0].mxu0
    %v1268 = vadd.f32 %v98, %v1267
    %v1269 = vpop.f32.mrb[0].mxu0
    %v1270 = vpop.f32.mrb[0].mxu0
    %v1271 = vpop.f32.mrb[0].mxu0
    %1272 = vdwg.mxu0
    %1274 = vrot.lane.b32.xlu0 %v1154, 64
    %v1275 = vpop.permute.xlu0 %1274
    %v1277 = vsel %vm177, %v1275, 0
    %1279 = vmatprep.subr.bf16.mxu0 0
    %1280 = vmatpush1.bf16.msra.mxu0 %v317
    %1281 = vmatprep.subr.bf16.mxu0 0
    %1282 = vmatpush1.bf16.msra.mxu0 %v318
    %1283 = vmatprep.subr.bf16.mxu0 0
    %1284 = vmatpush1.bf16.msra.mxu0 0
    %1285 = vmatprep.subr.bf16.mxu0 0
    %1286 = vmatpush1.bf16.msra.mxu0 0
    %1287 = vmatprep.subr.bf16.mxu0 0
    %1288 = vmatpush1.bf16.msra.mxu0 0
    %1289 = vmatprep.subr.bf16.mxu0 0
    %1290 = vmatpush1.bf16.msra.mxu0 0
    %1291 = vmatprep.subr.bf16.mxu0 0
    %1292 = vmatpush1.bf16.msra.mxu0 0
    %1293 = vmatprep.subr.bf16.mxu0 0
    %1294 = vmatpush1.bf16.msra.mxu0 0
    %1295 = vmatprep.subr.bf16.mxu0 0
    %1296 = vmatpush1.bf16.msra.mxu0 0
    %1297 = vmatprep.subr.bf16.mxu0 0
    %1298 = vmatpush1.bf16.msra.mxu0 0
    %1299 = vmatprep.subr.bf16.mxu0 0
    %1300 = vmatpush1.bf16.msra.mxu0 0
    %1301 = vmatprep.subr.bf16.mxu0 0
    %1302 = vmatpush1.bf16.msra.mxu0 0
    %1303 = vmatprep.subr.bf16.mxu0 0
    %1304 = vmatpush1.bf16.msra.mxu0 0
    %1305 = vmatprep.subr.bf16.mxu0 0
    %1306 = vmatpush1.bf16.msra.mxu0 0
    %1307 = vmatprep.subr.bf16.mxu0 0
    %1308 = vmatpush1.bf16.msra.mxu0 0
    %1309 = vmatprep.subr.bf16.mxu0 0
    %1310 = vmatpush1.bf16.msra.mxu0 0
    %1311 = vmatprep.mubr.bf16.mxu0 0
    %1312 = vmatmul.mubr.bf16.gmra.mrb[0].mxu0 %v1277
    %v1313 = vpop.f32.mrb[0].mxu0
    %v1314 = vadd.f32 0.0, %v1313
    %v1315 = vpop.f32.mrb[0].mxu0
    %v1316 = vpop.f32.mrb[0].mxu0
    %v1317 = vpop.f32.mrb[0].mxu0
    %1318 = vdwg.mxu0
    %v1319 = vadd.f32 %v1268, %v1314
    %v1320 = vxor.u32 %v1319, 2147483648
    %v1321 = vmul.f32 %v1320, 1.442695
    %v1322 = vpow.pop %v1321
    %v1323 = vadd.f32 %v1322, 1.0
    %v1324 = vrcp.pop %v1323
    %v1325 = vmul.f32 1.0, %v1324
    %v1326 = vtanh.pop %v1319
    %v1327 = vmul.f32 %v1325, %v1147
    %1329 = vrot.lane.b32.xlu0 %v1326, 32
    %v1330 = vpop.permute.xlu0 %1329
    %v1332 = vmul.f32 %v1325, %v1330
    %1334 = vrot.lane.b32.xlu0 %v1332, 32
    %v1335 = vpop.permute.xlu0 %1334
    %v1337 = vadd.f32 %v1327, %v1335
    %v1338 = vtanh.pop %v1337
    %1340 = vrot.lane.b32.xlu0 %v1338, 32
    %v1341 = vpop.permute.xlu0 %1340
    %v1343 = vmul.f32 %v1325, %v1341
    %v1344 = vpack.c.bf16 %v1343, %v1343
    %1346 = vrot.lane.b32.xlu0 %v1343, 64
    %v1347 = vpop.permute.xlu0 %1346
    %1349 = vst.msk [vmem:[#allocation3 + $0x5] sm:$0x1] %vm398, %v1347
    %v1350 = vld [vmem:[#allocation2 + $0x6] sm:$0x1]
    %1351 = vmatprep.subr.bf16.mxu0 0
    %1352 = vmatpush1.bf16.msra.mxu0 %v173
    %1353 = vmatprep.subr.bf16.mxu0 0
    %1354 = vmatpush1.bf16.msra.mxu0 %v174
    %1355 = vmatprep.subr.bf16.mxu0 0
    %1356 = vmatpush1.bf16.msra.mxu0 0
    %1357 = vmatprep.subr.bf16.mxu0 0
    %1358 = vmatpush1.bf16.msra.mxu0 0
    %1359 = vmatprep.subr.bf16.mxu0 0
    %1360 = vmatpush1.bf16.msra.mxu0 0
    %1361 = vmatprep.subr.bf16.mxu0 0
    %1362 = vmatpush1.bf16.msra.mxu0 0
    %1363 = vmatprep.subr.bf16.mxu0 0
    %1364 = vmatpush1.bf16.msra.mxu0 0
    %1365 = vmatprep.subr.bf16.mxu0 0
    %1366 = vmatpush1.bf16.msra.mxu0 0
    %1367 = vmatprep.subr.bf16.mxu0 0
    %1368 = vmatpush1.bf16.msra.mxu0 0
    %1369 = vmatprep.subr.bf16.mxu0 0
    %1370 = vmatpush1.bf16.msra.mxu0 0
    %1371 = vmatprep.subr.bf16.mxu0 0
    %1372 = vmatpush1.bf16.msra.mxu0 0
    %1373 = vmatprep.subr.bf16.mxu0 0
    %1374 = vmatpush1.bf16.msra.mxu0 0
    %1375 = vmatprep.subr.bf16.mxu0 0
    %1376 = vmatpush1.bf16.msra.mxu0 0
    %1377 = vmatprep.subr.bf16.mxu0 0
    %1378 = vmatpush1.bf16.msra.mxu0 0
    %1379 = vmatprep.subr.bf16.mxu0 0
    %1380 = vmatpush1.bf16.msra.mxu0 0
    %1381 = vmatprep.subr.bf16.mxu0 0
    %1382 = vmatpush1.bf16.msra.mxu0 0
    %1383 = vmatprep.mubr.bf16.mxu0 0
    %1384 = vmatmul.mubr.bf16.gmra.mrb[0].mxu0 %v1231
    %v1385 = vpop.f32.mrb[0].mxu0
    %v1386 = vadd.f32 0.0, %v1385
    %v1387 = vpop.f32.mrb[0].mxu0
    %v1388 = vpop.f32.mrb[0].mxu0
    %v1389 = vpop.f32.mrb[0].mxu0
    %1390 = vdwg.mxu0
    %v1391 = vadd.f32 %v1350, %v1386
    %v1392 = vxor.u32 %v1391, 2147483648
    %v1393 = vmul.f32 %v1392, 1.442695
    %v1394 = vpow.pop %v1393
    %v1395 = vadd.f32 %v1394, 1.0
    %v1396 = vrcp.pop %v1395
    %v1397 = vmul.f32 1.0, %v1396
    %v1398 = vtanh.pop %v1391
    %v1399 = vmul.f32 %v1397, %v1219
    %1401 = vrot.lane.b32.xlu0 %v1398, 32
    %v1402 = vpop.permute.xlu0 %1401
    %v1404 = vmul.f32 %v1397, %v1402
    %1406 = vrot.lane.b32.xlu0 %v1404, 32
    %v1407 = vpop.permute.xlu0 %1406
    %v1409 = vadd.f32 %v1399, %v1407
    %v1410 = vtanh.pop %v1409
    %1412 = vrot.lane.b32.xlu0 %v1410, 32
    %v1413 = vpop.permute.xlu0 %1412
    %v1415 = vmul.f32 %v1397, %v1413
    %v1416 = vpack.c.bf16 %v1415, %v1415
    %1418 = vrot.lane.b32.xlu0 %v1416, 64
    %v1419 = vpop.permute.xlu0 %1418
    %v1421 = vsel %vm177, %v1419, 0
    %1423 = vmatprep.subr.bf16.mxu0 0
    %1424 = vmatpush1.bf16.msra.mxu0 %v262
    %1425 = vmatprep.subr.bf16.mxu0 0
    %1426 = vmatpush1.bf16.msra.mxu0 %v263
    %1427 = vmatprep.subr.bf16.mxu0 0
    %1428 = vmatpush1.bf16.msra.mxu0 0
    %1429 = vmatprep.subr.bf16.mxu0 0
    %1430 = vmatpush1.bf16.msra.mxu0 0
    %1431 = vmatprep.subr.bf16.mxu0 0
    %1432 = vmatpush1.bf16.msra.mxu0 0
    %1433 = vmatprep.subr.bf16.mxu0 0
    %1434 = vmatpush1.bf16.msra.mxu0 0
    %1435 = vmatprep.subr.bf16.mxu0 0
    %1436 = vmatpush1.bf16.msra.mxu0 0
    %1437 = vmatprep.subr.bf16.mxu0 0
    %1438 = vmatpush1.bf16.msra.mxu0 0
    %1439 = vmatprep.subr.bf16.mxu0 0
    %1440 = vmatpush1.bf16.msra.mxu0 0
    %1441 = vmatprep.subr.bf16.mxu0 0
    %1442 = vmatpush1.bf16.msra.mxu0 0
    %1443 = vmatprep.subr.bf16.mxu0 0
    %1444 = vmatpush1.bf16.msra.mxu0 0
    %1445 = vmatprep.subr.bf16.mxu0 0
    %1446 = vmatpush1.bf16.msra.mxu0 0
    %1447 = vmatprep.subr.bf16.mxu0 0
    %1448 = vmatpush1.bf16.msra.mxu0 0
    %1449 = vmatprep.subr.bf16.mxu0 0
    %1450 = vmatpush1.bf16.msra.mxu0 0
    %1451 = vmatprep.subr.bf16.mxu0 0
    %1452 = vmatpush1.bf16.msra.mxu0 0
    %1453 = vmatprep.subr.bf16.mxu0 0
    %1454 = vmatpush1.bf16.msra.mxu0 0
    %1455 = vmatprep.mubr.bf16.mxu0 0
    %1456 = vmatmul.mubr.bf16.gmra.mrb[0].mxu0 %v1421
    %v1457 = vpop.f32.mrb[0].mxu0
    %v1458 = vadd.f32 %v98, %v1457
    %v1459 = vpop.f32.mrb[0].mxu0
    %v1460 = vpop.f32.mrb[0].mxu0
    %v1461 = vpop.f32.mrb[0].mxu0
    %1462 = vdwg.mxu0
    %1464 = vrot.lane.b32.xlu0 %v1344, 64
    %v1465 = vpop.permute.xlu0 %1464
    %v1467 = vsel %vm177, %v1465, 0
    %1469 = vmatprep.subr.bf16.mxu0 0
    %1470 = vmatpush1.bf16.msra.mxu0 %v317
    %1471 = vmatprep.subr.bf16.mxu0 0
    %1472 = vmatpush1.bf16.msra.mxu0 %v318
    %1473 = vmatprep.subr.bf16.mxu0 0
    %1474 = vmatpush1.bf16.msra.mxu0 0
    %1475 = vmatprep.subr.bf16.mxu0 0
    %1476 = vmatpush1.bf16.msra.mxu0 0
    %1477 = vmatprep.subr.bf16.mxu0 0
    %1478 = vmatpush1.bf16.msra.mxu0 0
    %1479 = vmatprep.subr.bf16.mxu0 0
    %1480 = vmatpush1.bf16.msra.mxu0 0
    %1481 = vmatprep.subr.bf16.mxu0 0
    %1482 = vmatpush1.bf16.msra.mxu0 0
    %1483 = vmatprep.subr.bf16.mxu0 0
    %1484 = vmatpush1.bf16.msra.mxu0 0
    %1485 = vmatprep.subr.bf16.mxu0 0
    %1486 = vmatpush1.bf16.msra.mxu0 0
    %1487 = vmatprep.subr.bf16.mxu0 0
    %1488 = vmatpush1.bf16.msra.mxu0 0
    %1489 = vmatprep.subr.bf16.mxu0 0
    %1490 = vmatpush1.bf16.msra.mxu0 0
    %1491 = vmatprep.subr.bf16.mxu0 0
    %1492 = vmatpush1.bf16.msra.mxu0 0
    %1493 = vmatprep.subr.bf16.mxu0 0
    %1494 = vmatpush1.bf16.msra.mxu0 0
    %1495 = vmatprep.subr.bf16.mxu0 0
    %1496 = vmatpush1.bf16.msra.mxu0 0
    %1497 = vmatprep.subr.bf16.mxu0 0
    %1498 = vmatpush1.bf16.msra.mxu0 0
    %1499 = vmatprep.subr.bf16.mxu0 0
    %1500 = vmatpush1.bf16.msra.mxu0 0
    %1501 = vmatprep.mubr.bf16.mxu0 0
    %1502 = vmatmul.mubr.bf16.gmra.mrb[0].mxu0 %v1467
    %v1503 = vpop.f32.mrb[0].mxu0
    %v1504 = vadd.f32 0.0, %v1503
    %v1505 = vpop.f32.mrb[0].mxu0
    %v1506 = vpop.f32.mrb[0].mxu0
    %v1507 = vpop.f32.mrb[0].mxu0
    %1508 = vdwg.mxu0
    %v1509 = vadd.f32 %v1458, %v1504
    %v1510 = vxor.u32 %v1509, 2147483648
    %v1511 = vmul.f32 %v1510, 1.442695
    %v1512 = vpow.pop %v1511
    %v1513 = vadd.f32 %v1512, 1.0
    %v1514 = vrcp.pop %v1513
    %v1515 = vmul.f32 1.0, %v1514
    %v1516 = vtanh.pop %v1509
    %v1517 = vmul.f32 %v1515, %v1337
    %1519 = vrot.lane.b32.xlu0 %v1516, 32
    %v1520 = vpop.permute.xlu0 %1519
    %v1522 = vmul.f32 %v1515, %v1520
    %1524 = vrot.lane.b32.xlu0 %v1522, 32
    %v1525 = vpop.permute.xlu0 %1524
    %v1527 = vadd.f32 %v1517, %v1525
    %v1528 = vtanh.pop %v1527
    %1530 = vrot.lane.b32.xlu0 %v1528, 32
    %v1531 = vpop.permute.xlu0 %1530
    %v1533 = vmul.f32 %v1515, %v1531
    %v1534 = vpack.c.bf16 %v1533, %v1533
    %1536 = vrot.lane.b32.xlu0 %v1533, 64
    %v1537 = vpop.permute.xlu0 %1536
    %1539 = vst.msk [vmem:[#allocation3 + $0x6] sm:$0x1] %vm398, %v1537
    %v1540 = vld [vmem:[#allocation2 + $0x7] sm:$0x1]
    %1541 = vmatprep.subr.bf16.mxu0 0
    %1542 = vmatpush1.bf16.msra.mxu0 %v173
    %1543 = vmatprep.subr.bf16.mxu0 0
    %1544 = vmatpush1.bf16.msra.mxu0 %v174
    %1545 = vmatprep.subr.bf16.mxu0 0
    %1546 = vmatpush1.bf16.msra.mxu0 0
    %1547 = vmatprep.subr.bf16.mxu0 0
    %1548 = vmatpush1.bf16.msra.mxu0 0
    %1549 = vmatprep.subr.bf16.mxu0 0
    %1550 = vmatpush1.bf16.msra.mxu0 0
    %1551 = vmatprep.subr.bf16.mxu0 0
    %1552 = vmatpush1.bf16.msra.mxu0 0
    %1553 = vmatprep.subr.bf16.mxu0 0
    %1554 = vmatpush1.bf16.msra.mxu0 0
    %1555 = vmatprep.subr.bf16.mxu0 0
    %1556 = vmatpush1.bf16.msra.mxu0 0
    %1557 = vmatprep.subr.bf16.mxu0 0
    %1558 = vmatpush1.bf16.msra.mxu0 0
    %1559 = vmatprep.subr.bf16.mxu0 0
    %1560 = vmatpush1.bf16.msra.mxu0 0
    %1561 = vmatprep.subr.bf16.mxu0 0
    %1562 = vmatpush1.bf16.msra.mxu0 0
    %1563 = vmatprep.subr.bf16.mxu0 0
    %1564 = vmatpush1.bf16.msra.mxu0 0
    %1565 = vmatprep.subr.bf16.mxu0 0
    %1566 = vmatpush1.bf16.msra.mxu0 0
    %1567 = vmatprep.subr.bf16.mxu0 0
    %1568 = vmatpush1.bf16.msra.mxu0 0
    %1569 = vmatprep.subr.bf16.mxu0 0
    %1570 = vmatpush1.bf16.msra.mxu0 0
    %1571 = vmatprep.subr.bf16.mxu0 0
    %1572 = vmatpush1.bf16.msra.mxu0 0
    %1573 = vmatprep.mubr.bf16.mxu0 0
    %1574 = vmatmul.mubr.bf16.gmra.mrb[0].mxu0 %v1421
    %v1575 = vpop.f32.mrb[0].mxu0
    %v1576 = vadd.f32 0.0, %v1575
    %v1577 = vpop.f32.mrb[0].mxu0
    %v1578 = vpop.f32.mrb[0].mxu0
    %v1579 = vpop.f32.mrb[0].mxu0
    %1580 = vdwg.mxu0
    %v1581 = vadd.f32 %v1540, %v1576
    %v1582 = vxor.u32 %v1581, 2147483648
    %v1583 = vmul.f32 %v1582, 1.442695
    %v1584 = vpow.pop %v1583
    %v1585 = vadd.f32 %v1584, 1.0
    %v1586 = vrcp.pop %v1585
    %v1587 = vmul.f32 1.0, %v1586
    %v1588 = vtanh.pop %v1581
    %v1589 = vmul.f32 %v1587, %v1409
    %1591 = vrot.lane.b32.xlu0 %v1588, 32
    %v1592 = vpop.permute.xlu0 %1591
    %v1594 = vmul.f32 %v1587, %v1592
    %1596 = vrot.lane.b32.xlu0 %v1594, 32
    %v1597 = vpop.permute.xlu0 %1596
    %v1599 = vadd.f32 %v1589, %v1597
    %v1600 = vtanh.pop %v1599
    %1602 = vrot.lane.b32.xlu0 %v1600, 32
    %v1603 = vpop.permute.xlu0 %1602
    %v1605 = vmul.f32 %v1587, %v1603
    %v1606 = vpack.c.bf16 %v1605, %v1605
    %1608 = vrot.lane.b32.xlu0 %v1606, 64
    %v1609 = vpop.permute.xlu0 %1608
    %v1611 = vsel %vm177, %v1609, 0
    %1613 = vmatprep.subr.bf16.mxu0 0
    %1614 = vmatpush1.bf16.msra.mxu0 %v262
    %1615 = vmatprep.subr.bf16.mxu0 0
    %1616 = vmatpush1.bf16.msra.mxu0 %v263
    %1617 = vmatprep.subr.bf16.mxu0 0
    %1618 = vmatpush1.bf16.msra.mxu0 0
    %1619 = vmatprep.subr.bf16.mxu0 0
    %1620 = vmatpush1.bf16.msra.mxu0 0
    %1621 = vmatprep.subr.bf16.mxu0 0
    %1622 = vmatpush1.bf16.msra.mxu0 0
    %1623 = vmatprep.subr.bf16.mxu0 0
    %1624 = vmatpush1.bf16.msra.mxu0 0
    %1625 = vmatprep.subr.bf16.mxu0 0
    %1626 = vmatpush1.bf16.msra.mxu0 0
    %1627 = vmatprep.subr.bf16.mxu0 0
    %1628 = vmatpush1.bf16.msra.mxu0 0
    %1629 = vmatprep.subr.bf16.mxu0 0
    %1630 = vmatpush1.bf16.msra.mxu0 0
    %1631 = vmatprep.subr.bf16.mxu0 0
    %1632 = vmatpush1.bf16.msra.mxu0 0
    %1633 = vmatprep.subr.bf16.mxu0 0
    %1634 = vmatpush1.bf16.msra.mxu0 0
    %1635 = vmatprep.subr.bf16.mxu0 0
    %1636 = vmatpush1.bf16.msra.mxu0 0
    %1637 = vmatprep.subr.bf16.mxu0 0
    %1638 = vmatpush1.bf16.msra.mxu0 0
    %1639 = vmatprep.subr.bf16.mxu0 0
    %1640 = vmatpush1.bf16.msra.mxu0 0
    %1641 = vmatprep.subr.bf16.mxu0 0
    %1642 = vmatpush1.bf16.msra.mxu0 0
    %1643 = vmatprep.subr.bf16.mxu0 0
    %1644 = vmatpush1.bf16.msra.mxu0 0
    %1645 = vmatprep.mubr.bf16.mxu0 0
    %1646 = vmatmul.mubr.bf16.gmra.mrb[0].mxu0 %v1611
    %v1647 = vpop.f32.mrb[0].mxu0
    %v1648 = vadd.f32 %v98, %v1647
    %v1649 = vpop.f32.mrb[0].mxu0
    %v1650 = vpop.f32.mrb[0].mxu0
    %v1651 = vpop.f32.mrb[0].mxu0
    %1652 = vdwg.mxu0
    %1654 = vrot.lane.b32.xlu0 %v1534, 64
    %v1655 = vpop.permute.xlu0 %1654
    %v1657 = vsel %vm177, %v1655, 0
    %1659 = vmatprep.subr.bf16.mxu0 0
    %1660 = vmatpush1.bf16.msra.mxu0 %v317
    %1661 = vmatprep.subr.bf16.mxu0 0
    %1662 = vmatpush1.bf16.msra.mxu0 %v318
    %1663 = vmatprep.subr.bf16.mxu0 0
    %1664 = vmatpush1.bf16.msra.mxu0 0
    %1665 = vmatprep.subr.bf16.mxu0 0
    %1666 = vmatpush1.bf16.msra.mxu0 0
    %1667 = vmatprep.subr.bf16.mxu0 0
    %1668 = vmatpush1.bf16.msra.mxu0 0
    %1669 = vmatprep.subr.bf16.mxu0 0
    %1670 = vmatpush1.bf16.msra.mxu0 0
    %1671 = vmatprep.subr.bf16.mxu0 0
    %1672 = vmatpush1.bf16.msra.mxu0 0
    %1673 = vmatprep.subr.bf16.mxu0 0
    %1674 = vmatpush1.bf16.msra.mxu0 0
    %1675 = vmatprep.subr.bf16.mxu0 0
    %1676 = vmatpush1.bf16.msra.mxu0 0
    %1677 = vmatprep.subr.bf16.mxu0 0
    %1678 = vmatpush1.bf16.msra.mxu0 0
    %1679 = vmatprep.subr.bf16.mxu0 0
    %1680 = vmatpush1.bf16.msra.mxu0 0
    %1681 = vmatprep.subr.bf16.mxu0 0
    %1682 = vmatpush1.bf16.msra.mxu0 0
    %1683 = vmatprep.subr.bf16.mxu0 0
    %1684 = vmatpush1.bf16.msra.mxu0 0
    %1685 = vmatprep.subr.bf16.mxu0 0
    %1686 = vmatpush1.bf16.msra.mxu0 0
    %1687 = vmatprep.subr.bf16.mxu0 0
    %1688 = vmatpush1.bf16.msra.mxu0 0
    %1689 = vmatprep.subr.bf16.mxu0 0
    %1690 = vmatpush1.bf16.msra.mxu0 0
    %1691 = vmatprep.mubr.bf16.mxu0 0
    %1692 = vmatmul.mubr.bf16.gmra.mrb[0].mxu0 %v1657
    %v1693 = vpop.f32.mrb[0].mxu0
    %v1694 = vadd.f32 0.0, %v1693
    %v1695 = vpop.f32.mrb[0].mxu0
    %v1696 = vpop.f32.mrb[0].mxu0
    %v1697 = vpop.f32.mrb[0].mxu0
    %1698 = vdwg.mxu0
    %v1699 = vadd.f32 %v1648, %v1694
    %v1700 = vxor.u32 %v1699, 2147483648
    %v1701 = vmul.f32 %v1700, 1.442695
    %v1702 = vpow.pop %v1701
    %v1703 = vadd.f32 %v1702, 1.0
    %v1704 = vrcp.pop %v1703
    %v1705 = vmul.f32 1.0, %v1704
    %v1706 = vtanh.pop %v1699
    %v1707 = vmul.f32 %v1705, %v1527
    %1709 = vrot.lane.b32.xlu0 %v1706, 32
    %v1710 = vpop.permute.xlu0 %1709
    %v1712 = vmul.f32 %v1705, %v1710
    %1714 = vrot.lane.b32.xlu0 %v1712, 32
    %v1715 = vpop.permute.xlu0 %1714
    %v1717 = vadd.f32 %v1707, %v1715
    %v1718 = vtanh.pop %v1717
    %1720 = vrot.lane.b32.xlu0 %v1718, 32
    %v1721 = vpop.permute.xlu0 %1720
    %v1723 = vmul.f32 %v1705, %v1721
    %1725 = vrot.lane.b32.xlu0 %v1723, 64
    %v1726 = vpop.permute.xlu0 %1725
    %1728 = vst.msk [vmem:[#allocation3 + $0x7] sm:$0x1] %vm398, %v1726
    %v1729 = vld [vmem:[#allocation3] sm:$0xff]
    %v1730 = vpack.c.bf16 %v1729, %v1729
    %v1731 = vld [vmem:[%s9] sm:$0xf]
    %v1732 = vld [vmem:[%s9 + $0x4] sm:$0xf]
    %v1733 = vld [vmem:[%s9 + $0x8] sm:$0xf]
    %v1734 = vld [vmem:[%s9 + $0xc] sm:$0xf]
    %v1735 = vld [vmem:[%s10] sm:$0x1]
    %v1737 = vlaneseq
    %v1738 = vshrl.u32 %v1737, 7
    %v1739 = vsub.s32 0, %v1738
    %v1740 = vrot.slane %v1735, %v1739
    %v1746 = vunpack.c.l.b16 %v1731
    %v1747 = vunpack.c.l.b16 %v1732
    %v1748 = vunpack.c.l.b16 %v1733
    %v1749 = vunpack.c.l.b16 %v1734
    %v1750 = vpack.c.b16 %v1747, %v1746
    %v1751 = vpack.c.b16 %v1749, %v1748
    %v1755 = vsel %vm177, %v1730, 0
    %1757 = vmatprep.subr.bf16.mxu0 0
    %1758 = vmatpush1.bf16.msra.mxu0 %v1750
    %1759 = vmatprep.subr.bf16.mxu0 0
    %1760 = vmatpush1.bf16.msra.mxu0 %v1751
    %1761 = vmatprep.subr.bf16.mxu0 0
    %1762 = vmatpush1.bf16.msra.mxu0 0
    %1763 = vmatprep.subr.bf16.mxu0 0
    %1764 = vmatpush1.bf16.msra.mxu0 0
    %1765 = vmatprep.subr.bf16.mxu0 0
    %1766 = vmatpush1.bf16.msra.mxu0 0
    %1767 = vmatprep.subr.bf16.mxu0 0
    %1768 = vmatpush1.bf16.msra.mxu0 0
    %1769 = vmatprep.subr.bf16.mxu0 0
    %1770 = vmatpush1.bf16.msra.mxu0 0
    %1771 = vmatprep.subr.bf16.mxu0 0
    %1772 = vmatpush1.bf16.msra.mxu0 0
    %1773 = vmatprep.subr.bf16.mxu0 0
    %1774 = vmatpush1.bf16.msra.mxu0 0
    %1775 = vmatprep.subr.bf16.mxu0 0
    %1776 = vmatpush1.bf16.msra.mxu0 0
    %1777 = vmatprep.subr.bf16.mxu0 0
    %1778 = vmatpush1.bf16.msra.mxu0 0
    %1779 = vmatprep.subr.bf16.mxu0 0
    %1780 = vmatpush1.bf16.msra.mxu0 0
    %1781 = vmatprep.subr.bf16.mxu0 0
    %1782 = vmatpush1.bf16.msra.mxu0 0
    %1783 = vmatprep.subr.bf16.mxu0 0
    %1784 = vmatpush1.bf16.msra.mxu0 0
    %1785 = vmatprep.subr.bf16.mxu0 0
    %1786 = vmatpush1.bf16.msra.mxu0 0
    %1787 = vmatprep.subr.bf16.mxu0 0
    %1788 = vmatpush1.bf16.msra.mxu0 0
    %1789 = vmatprep.mubr.bf16.mxu0 0
    %1790 = vmatmul.mubr.bf16.gmra.mrb[0].mxu0 %v1755
    %v1791 = vpop.f32.mrb[0].mxu0
    %v1792 = vadd.f32 %v1740, %v1791
    %v1793 = vpop.f32.mrb[0].mxu0
    %v1794 = vpop.f32.mrb[0].mxu0
    %v1795 = vpop.f32.mrb[0].mxu0
    %1796 = vdwg.mxu0
    %vm1797 = vcmask 162816
    %1798 = vst.msk [vmem:[#allocation10] sm:$0xff] %vm1797, %v1792
    %1800 = vrot.lane.b32.xlu0 %v1605, 64
    %v1801 = vpop.permute.xlu0 %1800
    %1803 = vst.msk [vmem:[#allocation11] sm:$0x1] %vm398, %v1801
    %1805 = vrot.lane.b32.xlu0 %v1599, 96
    %v1806 = vpop.permute.xlu0 %1805
    %1808 = vst.msk [vmem:[#allocation13] sm:$0x1] %vm398, %v1806
    %1809 = vst.msk [vmem:[#allocation11 + $0x1] sm:$0x1] %vm398, %v1726
    %1811 = vrot.lane.b32.xlu0 %v1717, 96
    %v1812 = vpop.permute.xlu0 %1811
    %1814 = vst.msk [vmem:[#allocation13 + $0x1] sm:$0x1] %vm398, %v1812
    // Predicated region
    $region58: #{tpu_custom_call.1} parent=1 // pred_check
      _
    $region59: #{tpu_custom_call.1} parent=1 // pred_check_branch
      %1816 = sbr.rel (0) target = $region61
    $region60: #{tpu_custom_call.1} parent=1 // pred_region
      %s1818 = ssub.s32 128, 128
      %1819 = vsyncadd [#allocation6], %s1818
      %s1821 = sshll.u32 [#allocation10], 4
      %s1822 = int_to_ptr.vmem [resolvable:$true] %s1821
      %1824 = dma.vmem_to_hbm [thread:$0]  %s1822, 128, %s11, [#allocation6]
    $region61: #{tpu_custom_call.1} parent=1 // pred_fallthru
      _
    // Predicated region
    $region62: #{tpu_custom_call.1} parent=1 // pred_check
      _
    $region63: #{tpu_custom_call.1} parent=1 // pred_check_branch
      %1826 = sbr.rel (0) target = $region65
    $region64: #{tpu_custom_call.1} parent=1 // pred_region
      %s1828 = ssub.s32 32, 32
      %1829 = vsyncadd [#allocation12], %s1828
      %s1831 = sshll.u32 [#allocation11], 4
      %s1832 = int_to_ptr.vmem [resolvable:$true] %s1831
      %1834 = dma.vmem_to_hbm [thread:$0]  %s1832, 32, %s12, [#allocation12]
    $region65: #{tpu_custom_call.1} parent=1 // pred_fallthru
      _
    // Predicated region
    $region66: #{tpu_custom_call.1} parent=1 // pred_check
      _
    $region67: #{tpu_custom_call.1} parent=1 // pred_check_branch
      %1836 = sbr.rel (0) target = $region69
    $region68: #{tpu_custom_call.1} parent=1 // pred_region
      %s1838 = ssub.s32 32, 32
      %1839 = vsyncadd [#allocation12], %s1838
      %s1841 = sshll.u32 [#allocation13], 4
      %s1842 = int_to_ptr.vmem [resolvable:$true] %s1841
      %1844 = dma.vmem_to_hbm [thread:$0]  %s1842, 32, %s13, [#allocation12]
    $region69: #{tpu_custom_call.1} parent=1 // pred_fallthru
      _
    // Predicated region
    $region70: #{tpu_custom_call.1} parent=1 // pred_check
      _
    $region71: #{tpu_custom_call.1} parent=1 // pred_check_branch
      %1846 = sbr.rel (0) target = $region73
    $region72: #{tpu_custom_call.1} parent=1 // pred_region
      %1847 = dma.done [#allocation6], 128
    $region73: #{tpu_custom_call.1} parent=1 // pred_fallthru
      _
    // Predicated region
    $region74: #{tpu_custom_call.1} parent=1 // pred_check
      _
    $region75: #{tpu_custom_call.1} parent=1 // pred_check_branch
      %1849 = sbr.rel (0) target = $region77
    $region76: #{tpu_custom_call.1} parent=1 // pred_region
      %1850 = dma.done [#allocation12], 32
    $region77: #{tpu_custom_call.1} parent=1 // pred_fallthru
      _
    // Predicated region
    $region78: #{tpu_custom_call.1} parent=1 // pred_check
      _
    $region79: #{tpu_custom_call.1} parent=1 // pred_check_branch
      %1852 = sbr.rel (0) target = $region81
    $region80: #{tpu_custom_call.1} parent=1 // pred_region
      %1853 = dma.done [#allocation12], 32
    $region81: #{tpu_custom_call.1} parent=1 // pred_fallthru
      _
    %1854 = vsyncpa [#allocation5], 1
    %1855 = vsyncpa [#allocation8], 1
    %1856 = vsyncpa [#allocation6], 1
    %1857 = vsyncpa [#allocation12], 1

</llo_original>
